<compile_context>
chip_gen: v7x
topology: tpu7x:2x2x1
jax: 0.10.0
libtpu: 0.0.40
codegen_flags: <defaults>
</compile_context>

<pallas_src>
import functools

import jax
import jax.numpy as jnp
from jax.experimental import pallas as pl
from jax.experimental.pallas import tpu as pltpu

OUT_PAD = 128  # lane-dense padded width of the final Linear output (true width 2)
MID_PAD = 128  # lane-dense padded width of the fc1 / BatchNorm / ReLU tail (true width H//4)


def _ende_gnn_decoder_kernel(
    xt_ref,                 # (N*B, F)   t-major input rows (row = t*B + b)
    whc_ref,                # (2F, 2H)   fused fc_hc weight (consumes [x_max, x_avg])
    bhc_ref,                # (1, 2H)
    wih_ref,                # (F, 4H)    fused LSTM input weights; i/f/o columns pre-scaled by 0.5
    whh_ref,                # (H, 4H)    fused LSTM hidden weights; i/f/o columns pre-scaled by 0.5
    bl_ref,                 # (1, 4H)    (b_ih + b_hh); i/f/o lanes pre-scaled by 0.5
    w1p_ref, b1p_ref,       # (H, MID_PAD), (1, MID_PAD)       zero padded
    gammap_ref, betap_ref,  # (1, MID_PAD), (1, MID_PAD)       zero padded
    w2p_ref, b2p_ref,       # (MID_PAD, OUT_PAD), (1, OUT_PAD) zero padded
    out_ref,                # (B*N, OUT_PAD)  graph-major rows
    *, points_num,
):
    NB, F = xt_ref.shape
    H = whh_ref.shape[0]
    N = points_num
    B = NB // N

    xt = xt_ref[...]                             # (N*B, F) f32, t-major
    x3 = xt.reshape(N, B, F)

    # ---- global max / mean pool over the N points of each graph ----
    x_max = jnp.max(x3, axis=0)                  # (B, F)
    x_avg = jnp.sum(x3, axis=0) * (1.0 / N)      # (B, F)

    # ---- fc_hc([max, avg]) -> tanh -> split into (hidden, cell); one matmul ----
    pooled = jnp.concatenate([x_max, x_avg], axis=1)                 # (B, 2F)
    hc = jnp.tanh(
        jnp.dot(pooled, whc_ref[...], preferred_element_type=jnp.float32)
        + bhc_ref[...])                          # (B, 2H)
    h = hc[:, :H]
    c = hc[:, H:]

    # ---- hoisted LSTM input projection (+ fused bias), one matmul, t-major ----
    xp = (jnp.dot(xt, wih_ref[...], preferred_element_type=jnp.float32)
          + bl_ref[...])                         # (N*B, 4H)
    xp3 = xp.reshape(N, B, 4 * H)                # xp3[t] is a contiguous (B, 4H) block

    whh = whh_ref[...]                           # hoisted out of the loop

    # sigmoid(a) = 0.5*tanh(a/2) + 0.5 ; the /2 is already folded into the
    # packed weights for the i/f/o gate lanes, so each step needs only ONE
    # full-width tanh plus a masked affine fixup (constants hoisted here).
    lane = jax.lax.broadcasted_iota(jnp.int32, (1, 4 * H), 1)
    is_sig = jnp.logical_or(lane < 2 * H, lane >= 3 * H)   # i, f, o lanes
    post_mul = jnp.where(is_sig, 0.5, 1.0)
    post_add = jnp.where(is_sig, 0.5, 0.0)

    # ---- single-layer LSTM recurrence (statically unrolled; right for N<=~32) ----
    # TODO(synk): for large N switch to lax.fori_loop(unroll=k) with a VMEM
    # scratch for the outputs (vreg pressure); for tiny B consider
    # pltpu.matmul_push_rhs/acc_lhs/pop to keep whh resident in the MXU.
    h_steps = []
    for t in range(N):
        g = xp3[t] + jnp.dot(h, whh, preferred_element_type=jnp.float32)  # (B, 4H)
        gact = jnp.tanh(g) * post_mul + post_add          # one full-width EUP push
        i_g = gact[:, 0 * H:1 * H]
        f_g = gact[:, 1 * H:2 * H]
        g_g = gact[:, 2 * H:3 * H]
        o_g = gact[:, 3 * H:4 * H]
        c = f_g * c + i_g * g_g
        h = o_g * jnp.tanh(c)
        h_steps.append(h)                        # kept in registers

    # (B, N, H) -> (B*N, H) == outputs.permute(1,0,2).contiguous().view(-1,H)
    outs = jnp.stack(h_steps, axis=1).reshape(B * N, H)

    # ---- fc_params: Linear -> BatchNorm1d (batch stats) -> ReLU -> Linear ----
    # Lane-dense tail: all (BN, 128) ops run on full vregs; padded lanes carry
    # exact zeros end-to-end (gamma = beta = 0 on padded lanes).
    z = jnp.dot(outs, w1p_ref[...], preferred_element_type=jnp.float32) + b1p_ref[...]
    inv_bn = 1.0 / (B * N)
    mean = jnp.sum(z, axis=0, keepdims=True) * inv_bn
    zc = z - mean
    var = jnp.sum(zc * zc, axis=0, keepdims=True) * inv_bn   # two-pass, biased
    zn = zc * jax.lax.rsqrt(var + 1e-5)
    zn = zn * gammap_ref[...] + betap_ref[...]
    zn = jnp.maximum(zn, 0.0)

    # lane-dense store: (BN, 128) @ (128, 128) -> (BN, 128)
    out_ref[...] = (jnp.dot(zn, w2p_ref[...], preferred_element_type=jnp.float32)
                    + b2p_ref[...])


def pack_ende_gnn_decoder_params(params, *, dec_hidden_size):
    """One-time weight repacking (transposes, gate fusion, sigmoid pre-scale,
    lane-dense zero padding).  Call once at parameter-load time."""
    H = dec_hidden_size
    H4 = H // 4
    # NOTE: the kernel is tuned around 4H == 128 (one lane-dense gate slab);
    # other H values stay numerically correct but lose that property.

    W_hc = jnp.asarray(params['fc_hc_w'], jnp.float32)        # (2H, 2F)
    whc = W_hc.T                                              # (2F, 2H)
    bhc = jnp.asarray(params['fc_hc_b'], jnp.float32).reshape(1, 2 * H)

    # PyTorch stacks gates as rows [i; f; g; o]; transposing puts them as
    # contiguous H-lane column blocks of one 4H-lane slab.  i/f/o columns are
    # pre-scaled by 0.5 so sigmoid(a) = 0.5*tanh(a/2) + 0.5 needs only one
    # in-kernel tanh per step.
    wih = jnp.asarray(params['lstm_w_ih'], jnp.float32).T     # (F, 4H)
    whh = jnp.asarray(params['lstm_w_hh'], jnp.float32).T     # (H, 4H)
    bl = (jnp.asarray(params['lstm_b_ih'], jnp.float32)
          + jnp.asarray(params['lstm_b_hh'], jnp.float32)).reshape(1, 4 * H)
    lane = jnp.arange(4 * H)
    sig_scale = jnp.where((lane < 2 * H) | (lane >= 3 * H), 0.5, 1.0)
    wih = wih * sig_scale
    whh = whh * sig_scale
    bl = bl * sig_scale

    # fc1 / BatchNorm tail zero-padded to MID_PAD lanes (padded lanes stay 0
    # through BN because gamma = beta = 0 there).
    w1 = jnp.asarray(params['fc1_w'], jnp.float32).T          # (H, H4)
    w1p = jnp.zeros((H, MID_PAD), jnp.float32).at[:, :H4].set(w1)
    b1p = jnp.zeros((1, MID_PAD), jnp.float32).at[0, :H4].set(
        jnp.asarray(params['fc1_b'], jnp.float32))
    gammap = jnp.zeros((1, MID_PAD), jnp.float32).at[0, :H4].set(
        jnp.asarray(params['bn_gamma'], jnp.float32))
    betap = jnp.zeros((1, MID_PAD), jnp.float32).at[0, :H4].set(
        jnp.asarray(params['bn_beta'], jnp.float32))

    # fc2 zero-padded to a lane-dense (MID_PAD, OUT_PAD) slab.
    w2 = jnp.asarray(params['fc2_w'], jnp.float32).T          # (H4, 2)
    n_out = w2.shape[1]
    w2p = jnp.zeros((MID_PAD, OUT_PAD), jnp.float32).at[:H4, :n_out].set(w2)
    b2p = jnp.zeros((1, OUT_PAD), jnp.float32).at[0, :n_out].set(
        jnp.asarray(params['fc2_b'], jnp.float32))

    return dict(whc=whc, bhc=bhc, wih=wih, whh=whh, bl=bl,
                w1p=w1p, b1p=b1p, gammap=gammap, betap=betap,
                w2p=w2p, b2p=b2p, n_out=int(n_out))


def ende_gnn_decoder_forward(x, edge_index, batch_vec, packed, *,
                             points_num, dec_hidden_size):
    """x: (B*N, F) float32 in graph-major row order.  Returns (B*N, 2) float32."""
    # edge_index is unused by the PyTorch forward as well.
    # TODO(synk): pooling + BatchNorm statistics assume data['batch'] is the
    # contiguous [0]*N ++ [1]*N ++ ... vector implied by x.view(B, N, -1);
    # arbitrary segment assignments are not handled in-kernel.  BatchNorm uses
    # training-mode batch statistics (no running-stats eval path).
    del edge_index, batch_vec, dec_hidden_size
    BN, F = x.shape
    N = points_num
    B = BN // N

    x = x.astype(jnp.float32)
    # Layout plumbing only: hand the kernel a t-major row order so the serial
    # recurrence reads contiguous (B, 4H) blocks instead of stride-N gathers.
    xt = x.reshape(B, N, F).transpose(1, 0, 2).reshape(N * B, F)

    args = (xt, packed['whc'], packed['bhc'],
            packed['wih'], packed['whh'], packed['bl'],
            packed['w1p'], packed['b1p'], packed['gammap'], packed['betap'],
            packed['w2p'], packed['b2p'])

    vmem = pl.BlockSpec(memory_space=pltpu.MemorySpace.VMEM)
    out_padded = pl.pallas_call(
        functools.partial(_ende_gnn_decoder_kernel, points_num=N),
        out_shape=jax.ShapeDtypeStruct((BN, OUT_PAD), jnp.float32),
        in_specs=[vmem] * len(args),
        out_specs=vmem,
    )(*args)
    # TODO(synk): at scale (large B*N), add a grid over the graph dim with
    # dimension_semantics=("parallel",) (uses both v7x TCs, stays under its
    # 64 MiB VMEM) with a two-pass BatchNorm finalize; cast matmul operands to
    # bf16 on v6e/v7x; and reconsider OUT_PAD on v5e (HBM-write waste).
    return out_padded[:, :packed['n_out']]


def reference_forward(x, params, *, points_num, dec_hidden_size):
    """Pure-JAX reference mirroring the PyTorch forward."""
    BN, F = x.shape
    B = BN // points_num
    H = dec_hidden_size
    x3 = x.reshape(B, points_num, F)
    x_max = x3.max(axis=1)
    x_avg = x3.mean(axis=1)
    hc = jnp.concatenate([x_max, x_avg], axis=1)
    hc = jnp.tanh(hc @ params['fc_hc_w'].T + params['fc_hc_b'])
    h, c = hc[:, :H], hc[:, H:]
    wih, whh = params['lstm_w_ih'], params['lstm_w_hh']
    b = params['lstm_b_ih'] + params['lstm_b_hh']
    outs = []
    for t in range(points_num):
        g = x3[:, t, :] @ wih.T + h @ whh.T + b
        i_g = jax.nn.sigmoid(g[:, :H])
        f_g = jax.nn.sigmoid(g[:, H:2 * H])
        g_g = jnp.tanh(g[:, 2 * H:3 * H])
        o_g = jax.nn.sigmoid(g[:, 3 * H:])
        c = f_g * c + i_g * g_g
        h = o_g * jnp.tanh(c)
        outs.append(h)
    outs = jnp.stack(outs, axis=1).reshape(BN, H)
    z = outs @ params['fc1_w'].T + params['fc1_b']
    mean = z.mean(axis=0)
    var = ((z - mean) ** 2).mean(axis=0)
    z = (z - mean) / jnp.sqrt(var + 1e-5) * params['bn_gamma'] + params['bn_beta']
    z = jnp.maximum(z, 0.0)
    return z @ params['fc2_w'].T + params['fc2_b']


if __name__ == "__main__":
    # Small shapes consistent with the module:
    B, N = 2, 8                    # batch_size, points_num
    channels, n_blocks = 4, 3
    F = channels * (n_blocks + 1)  # LSTM / pooled feature size = 16
    H = 32                         # dec_hidden_size
    H4 = H // 4

    key = jax.random.PRNGKey(0)
    keys = jax.random.split(key, 12)

    def init(k, shape, scale=0.1):
        return scale * jax.random.normal(k, shape, dtype=jnp.float32)

    params = {
        'fc_hc_w':  init(keys[0], (2 * H, 2 * F)),
        'fc_hc_b':  init(keys[1], (2 * H,)),
        'lstm_w_ih': init(keys[2], (4 * H, F)),
        'lstm_w_hh': init(keys[3], (4 * H, H)),
        'lstm_b_ih': init(keys[4], (4 * H,)),
        'lstm_b_hh': init(keys[5], (4 * H,)),
        'fc1_w':    init(keys[6], (H4, H)),
        'fc1_b':    init(keys[7], (H4,)),
        'bn_gamma': jnp.ones((H4,), jnp.float32),
        'bn_beta':  jnp.zeros((H4,), jnp.float32),
        'fc2_w':    init(keys[8], (2, H4)),
        'fc2_b':    init(keys[9], (2,)),
    }

    x = jax.random.normal(keys[10], (B * N, F), dtype=jnp.float32)
    edge_index = jnp.zeros((2, B * N), dtype=jnp.int32)               # unused
    batch_vec = jnp.repeat(jnp.arange(B, dtype=jnp.int32), N)         # data['batch']

    packed = pack_ende_gnn_decoder_params(params, dec_hidden_size=H)

    out = ende_gnn_decoder_forward(x, edge_index, batch_vec, packed,
                                   points_num=N, dec_hidden_size=H)
    out = jax.block_until_ready(out)

    ref = reference_forward(x, params, points_num=N, dec_hidden_size=H)
    assert out.shape == (B * N, 2), out.shape
    max_err = float(jnp.max(jnp.abs(out - ref)))
    assert jnp.allclose(out, ref, atol=5e-2, rtol=5e-2), max_err
    print("KERNEL_OK")
</pallas_src>

<mosaic_0001>
module attributes {stable_mosaic.version = 11 : i64} {
  func.func @_ende_gnn_decoder_kernel(%arg0: memref<16x16xf32, #tpu.memory_space<vmem>>, %arg1: memref<32x64xf32, #tpu.memory_space<vmem>>, %arg2: memref<1x64xf32, #tpu.memory_space<vmem>>, %arg3: memref<16x128xf32, #tpu.memory_space<vmem>>, %arg4: memref<32x128xf32, #tpu.memory_space<vmem>>, %arg5: memref<1x128xf32, #tpu.memory_space<vmem>>, %arg6: memref<32x128xf32, #tpu.memory_space<vmem>>, %arg7: memref<1x128xf32, #tpu.memory_space<vmem>>, %arg8: memref<1x128xf32, #tpu.memory_space<vmem>>, %arg9: memref<1x128xf32, #tpu.memory_space<vmem>>, %arg10: memref<128x128xf32, #tpu.memory_space<vmem>>, %arg11: memref<1x128xf32, #tpu.memory_space<vmem>>, %arg12: memref<16x128xf32, #tpu.memory_space<vmem>>) attributes {dimension_semantics = [], scalar_prefetch = 0 : i64, scratch_operands = 0 : i64, tpu.core_type = #tpu.core_type<tc>} {
    %c0 = arith.constant 0 : index
    %c0_0 = arith.constant 0 : index
    %0 = vector.load %arg0[%c0, %c0_0] : memref<16x16xf32, #tpu.memory_space<vmem>>, vector<16x16xf32>
    %1 = vector.shape_cast %0 : vector<16x16xf32> to vector<8x2x16xf32>
    %cst = arith.constant dense<0xFF800000> : vector<2x16xf32>
    %2 = vector.multi_reduction <maximumf>, %1, %cst [0] : vector<8x2x16xf32> to vector<2x16xf32>
    %cst_1 = arith.constant dense<0.000000e+00> : vector<2x16xf32>
    %3 = vector.multi_reduction <add>, %1, %cst_1 [0] : vector<8x2x16xf32> to vector<2x16xf32>
    %cst_2 = arith.constant 1.250000e-01 : f32
    %4 = vector.broadcast %cst_2 : f32 to vector<2x16xf32>
    %5 = arith.mulf %3, %4 : vector<2x16xf32>
    %6 = tpu.concatenate %2, %5 in 1 : vector<2x16xf32>, vector<2x16xf32> -> vector<2x32xf32>
    %c0_3 = arith.constant 0 : index
    %c0_4 = arith.constant 0 : index
    %7 = vector.load %arg1[%c0_3, %c0_4] : memref<32x64xf32, #tpu.memory_space<vmem>>, vector<32x64xf32>
    %cst_5 = arith.constant dense<0.000000e+00> : vector<2x64xf32>
    %8 = tpu.matmul %6, %7, %cst_5 {dimension_numbers = #tpu.dot_dimension_numbers<[1], [0], [0], [1], [0, 0, 1, 1], [], []>} : vector<2x32xf32>, vector<32x64xf32>, vector<2x64xf32> -> vector<2x64xf32>
    %c0_6 = arith.constant 0 : index
    %c0_7 = arith.constant 0 : index
    %9 = vector.load %arg2[%c0_6, %c0_7] : memref<1x64xf32, #tpu.memory_space<vmem>>, vector<1x64xf32>
    %10 = vector.broadcast %9 : vector<1x64xf32> to vector<2x64xf32>
    %11 = arith.addf %8, %10 : vector<2x64xf32>
    %12 = math.tanh %11 : vector<2x64xf32>
    %13 = vector.extract_strided_slice %12 {offsets = [0, 0], sizes = [2, 32], strides = [1, 1]} : vector<2x64xf32> to vector<2x32xf32>
    %14 = vector.extract_strided_slice %12 {offsets = [0, 32], sizes = [2, 32], strides = [1, 1]} : vector<2x64xf32> to vector<2x32xf32>
    %c0_8 = arith.constant 0 : index
    %c0_9 = arith.constant 0 : index
    %15 = vector.load %arg3[%c0_8, %c0_9] : memref<16x128xf32, #tpu.memory_space<vmem>>, vector<16x128xf32>
    %cst_10 = arith.constant dense<0.000000e+00> : vector<16x128xf32>
    %16 = tpu.matmul %0, %15, %cst_10 {dimension_numbers = #tpu.dot_dimension_numbers<[1], [0], [0], [1], [0, 0, 1, 1], [], []>} : vector<16x16xf32>, vector<16x128xf32>, vector<16x128xf32> -> vector<16x128xf32>
    %c0_11 = arith.constant 0 : index
    %c0_12 = arith.constant 0 : index
    %17 = vector.load %arg5[%c0_11, %c0_12] : memref<1x128xf32, #tpu.memory_space<vmem>>, vector<1x128xf32>
    %18 = vector.broadcast %17 : vector<1x128xf32> to vector<16x128xf32>
    %19 = arith.addf %16, %18 : vector<16x128xf32>
    %20 = vector.shape_cast %19 : vector<16x128xf32> to vector<8x2x128xf32>
    %c0_13 = arith.constant 0 : index
    %c0_14 = arith.constant 0 : index
    %21 = vector.load %arg4[%c0_13, %c0_14] : memref<32x128xf32, #tpu.memory_space<vmem>>, vector<32x128xf32>
    %22 = tpu.iota {dimensions = array<i32: 1>} : vector<1x128xi32>
    %c64_i32 = arith.constant 64 : i32
    %23 = vector.broadcast %c64_i32 : i32 to vector<1x128xi32>
    %24 = arith.cmpi slt, %22, %23 : vector<1x128xi32>
    %c96_i32 = arith.constant 96 : i32
    %25 = vector.broadcast %c96_i32 : i32 to vector<1x128xi32>
    %26 = arith.cmpi sge, %22, %25 : vector<1x128xi32>
    %27 = arith.ori %24, %26 : vector<1x128xi1>
    %cst_15 = arith.constant 5.000000e-01 : f32
    %cst_16 = arith.constant 1.000000e+00 : f32
    %28 = vector.broadcast %cst_15 : f32 to vector<1x128xf32>
    %29 = vector.broadcast %cst_16 : f32 to vector<1x128xf32>
    %30 = arith.select %27, %28, %29 : vector<1x128xi1>, vector<1x128xf32>
    %cst_17 = arith.constant 5.000000e-01 : f32
    %cst_18 = arith.constant 0.000000e+00 : f32
    %31 = vector.broadcast %cst_17 : f32 to vector<1x128xf32>
    %32 = vector.broadcast %cst_18 : f32 to vector<1x128xf32>
    %33 = arith.select %27, %31, %32 : vector<1x128xi1>, vector<1x128xf32>
    %34 = vector.extract_strided_slice %20 {offsets = [0, 0, 0], sizes = [1, 2, 128], strides = [1, 1, 1]} : vector<8x2x128xf32> to vector<1x2x128xf32>
    %35 = vector.shape_cast %34 : vector<1x2x128xf32> to vector<2x128xf32>
    %cst_19 = arith.constant dense<0.000000e+00> : vector<2x128xf32>
    %36 = tpu.matmul %13, %21, %cst_19 {dimension_numbers = #tpu.dot_dimension_numbers<[1], [0], [0], [1], [0, 0, 1, 1], [], []>} : vector<2x32xf32>, vector<32x128xf32>, vector<2x128xf32> -> vector<2x128xf32>
    %37 = arith.addf %35, %36 : vector<2x128xf32>
    %38 = math.tanh %37 : vector<2x128xf32>
    %39 = vector.broadcast %30 : vector<1x128xf32> to vector<2x128xf32>
    %40 = arith.mulf %38, %39 : vector<2x128xf32>
    %41 = vector.broadcast %33 : vector<1x128xf32> to vector<2x128xf32>
    %42 = arith.addf %40, %41 : vector<2x128xf32>
    %43 = vector.extract_strided_slice %42 {offsets = [0, 0], sizes = [2, 32], strides = [1, 1]} : vector<2x128xf32> to vector<2x32xf32>
    %44 = vector.extract_strided_slice %42 {offsets = [0, 32], sizes = [2, 32], strides = [1, 1]} : vector<2x128xf32> to vector<2x32xf32>
    %45 = vector.extract_strided_slice %42 {offsets = [0, 64], sizes = [2, 32], strides = [1, 1]} : vector<2x128xf32> to vector<2x32xf32>
    %46 = vector.extract_strided_slice %42 {offsets = [0, 96], sizes = [2, 32], strides = [1, 1]} : vector<2x128xf32> to vector<2x32xf32>
    %47 = arith.mulf %44, %14 : vector<2x32xf32>
    %48 = arith.mulf %43, %45 : vector<2x32xf32>
    %49 = arith.addf %47, %48 : vector<2x32xf32>
    %50 = math.tanh %49 : vector<2x32xf32>
    %51 = arith.mulf %46, %50 : vector<2x32xf32>
    %52 = vector.extract_strided_slice %20 {offsets = [1, 0, 0], sizes = [1, 2, 128], strides = [1, 1, 1]} : vector<8x2x128xf32> to vector<1x2x128xf32>
    %53 = vector.shape_cast %52 : vector<1x2x128xf32> to vector<2x128xf32>
    %cst_20 = arith.constant dense<0.000000e+00> : vector<2x128xf32>
    %54 = tpu.matmul %51, %21, %cst_20 {dimension_numbers = #tpu.dot_dimension_numbers<[1], [0], [0], [1], [0, 0, 1, 1], [], []>} : vector<2x32xf32>, vector<32x128xf32>, vector<2x128xf32> -> vector<2x128xf32>
    %55 = arith.addf %53, %54 : vector<2x128xf32>
    %56 = math.tanh %55 : vector<2x128xf32>
    %57 = vector.broadcast %30 : vector<1x128xf32> to vector<2x128xf32>
    %58 = arith.mulf %56, %57 : vector<2x128xf32>
    %59 = vector.broadcast %33 : vector<1x128xf32> to vector<2x128xf32>
    %60 = arith.addf %58, %59 : vector<2x128xf32>
    %61 = vector.extract_strided_slice %60 {offsets = [0, 0], sizes = [2, 32], strides = [1, 1]} : vector<2x128xf32> to vector<2x32xf32>
    %62 = vector.extract_strided_slice %60 {offsets = [0, 32], sizes = [2, 32], strides = [1, 1]} : vector<2x128xf32> to vector<2x32xf32>
    %63 = vector.extract_strided_slice %60 {offsets = [0, 64], sizes = [2, 32], strides = [1, 1]} : vector<2x128xf32> to vector<2x32xf32>
    %64 = vector.extract_strided_slice %60 {offsets = [0, 96], sizes = [2, 32], strides = [1, 1]} : vector<2x128xf32> to vector<2x32xf32>
    %65 = arith.mulf %62, %49 : vector<2x32xf32>
    %66 = arith.mulf %61, %63 : vector<2x32xf32>
    %67 = arith.addf %65, %66 : vector<2x32xf32>
    %68 = math.tanh %67 : vector<2x32xf32>
    %69 = arith.mulf %64, %68 : vector<2x32xf32>
    %70 = vector.extract_strided_slice %20 {offsets = [2, 0, 0], sizes = [1, 2, 128], strides = [1, 1, 1]} : vector<8x2x128xf32> to vector<1x2x128xf32>
    %71 = vector.shape_cast %70 : vector<1x2x128xf32> to vector<2x128xf32>
    %cst_21 = arith.constant dense<0.000000e+00> : vector<2x128xf32>
    %72 = tpu.matmul %69, %21, %cst_21 {dimension_numbers = #tpu.dot_dimension_numbers<[1], [0], [0], [1], [0, 0, 1, 1], [], []>} : vector<2x32xf32>, vector<32x128xf32>, vector<2x128xf32> -> vector<2x128xf32>
    %73 = arith.addf %71, %72 : vector<2x128xf32>
    %74 = math.tanh %73 : vector<2x128xf32>
    %75 = vector.broadcast %30 : vector<1x128xf32> to vector<2x128xf32>
    %76 = arith.mulf %74, %75 : vector<2x128xf32>
    %77 = vector.broadcast %33 : vector<1x128xf32> to vector<2x128xf32>
    %78 = arith.addf %76, %77 : vector<2x128xf32>
    %79 = vector.extract_strided_slice %78 {offsets = [0, 0], sizes = [2, 32], strides = [1, 1]} : vector<2x128xf32> to vector<2x32xf32>
    %80 = vector.extract_strided_slice %78 {offsets = [0, 32], sizes = [2, 32], strides = [1, 1]} : vector<2x128xf32> to vector<2x32xf32>
    %81 = vector.extract_strided_slice %78 {offsets = [0, 64], sizes = [2, 32], strides = [1, 1]} : vector<2x128xf32> to vector<2x32xf32>
    %82 = vector.extract_strided_slice %78 {offsets = [0, 96], sizes = [2, 32], strides = [1, 1]} : vector<2x128xf32> to vector<2x32xf32>
    %83 = arith.mulf %80, %67 : vector<2x32xf32>
    %84 = arith.mulf %79, %81 : vector<2x32xf32>
    %85 = arith.addf %83, %84 : vector<2x32xf32>
    %86 = math.tanh %85 : vector<2x32xf32>
    %87 = arith.mulf %82, %86 : vector<2x32xf32>
    %88 = vector.extract_strided_slice %20 {offsets = [3, 0, 0], sizes = [1, 2, 128], strides = [1, 1, 1]} : vector<8x2x128xf32> to vector<1x2x128xf32>
    %89 = vector.shape_cast %88 : vector<1x2x128xf32> to vector<2x128xf32>
    %cst_22 = arith.constant dense<0.000000e+00> : vector<2x128xf32>
    %90 = tpu.matmul %87, %21, %cst_22 {dimension_numbers = #tpu.dot_dimension_numbers<[1], [0], [0], [1], [0, 0, 1, 1], [], []>} : vector<2x32xf32>, vector<32x128xf32>, vector<2x128xf32> -> vector<2x128xf32>
    %91 = arith.addf %89, %90 : vector<2x128xf32>
    %92 = math.tanh %91 : vector<2x128xf32>
    %93 = vector.broadcast %30 : vector<1x128xf32> to vector<2x128xf32>
    %94 = arith.mulf %92, %93 : vector<2x128xf32>
    %95 = vector.broadcast %33 : vector<1x128xf32> to vector<2x128xf32>
    %96 = arith.addf %94, %95 : vector<2x128xf32>
    %97 = vector.extract_strided_slice %96 {offsets = [0, 0], sizes = [2, 32], strides = [1, 1]} : vector<2x128xf32> to vector<2x32xf32>
    %98 = vector.extract_strided_slice %96 {offsets = [0, 32], sizes = [2, 32], strides = [1, 1]} : vector<2x128xf32> to vector<2x32xf32>
    %99 = vector.extract_strided_slice %96 {offsets = [0, 64], sizes = [2, 32], strides = [1, 1]} : vector<2x128xf32> to vector<2x32xf32>
    %100 = vector.extract_strided_slice %96 {offsets = [0, 96], sizes = [2, 32], strides = [1, 1]} : vector<2x128xf32> to vector<2x32xf32>
    %101 = arith.mulf %98, %85 : vector<2x32xf32>
    %102 = arith.mulf %97, %99 : vector<2x32xf32>
    %103 = arith.addf %101, %102 : vector<2x32xf32>
    %104 = math.tanh %103 : vector<2x32xf32>
    %105 = arith.mulf %100, %104 : vector<2x32xf32>
    %106 = vector.extract_strided_slice %20 {offsets = [4, 0, 0], sizes = [1, 2, 128], strides = [1, 1, 1]} : vector<8x2x128xf32> to vector<1x2x128xf32>
    %107 = vector.shape_cast %106 : vector<1x2x128xf32> to vector<2x128xf32>
    %cst_23 = arith.constant dense<0.000000e+00> : vector<2x128xf32>
    %108 = tpu.matmul %105, %21, %cst_23 {dimension_numbers = #tpu.dot_dimension_numbers<[1], [0], [0], [1], [0, 0, 1, 1], [], []>} : vector<2x32xf32>, vector<32x128xf32>, vector<2x128xf32> -> vector<2x128xf32>
    %109 = arith.addf %107, %108 : vector<2x128xf32>
    %110 = math.tanh %109 : vector<2x128xf32>
    %111 = vector.broadcast %30 : vector<1x128xf32> to vector<2x128xf32>
    %112 = arith.mulf %110, %111 : vector<2x128xf32>
    %113 = vector.broadcast %33 : vector<1x128xf32> to vector<2x128xf32>
    %114 = arith.addf %112, %113 : vector<2x128xf32>
    %115 = vector.extract_strided_slice %114 {offsets = [0, 0], sizes = [2, 32], strides = [1, 1]} : vector<2x128xf32> to vector<2x32xf32>
    %116 = vector.extract_strided_slice %114 {offsets = [0, 32], sizes = [2, 32], strides = [1, 1]} : vector<2x128xf32> to vector<2x32xf32>
    %117 = vector.extract_strided_slice %114 {offsets = [0, 64], sizes = [2, 32], strides = [1, 1]} : vector<2x128xf32> to vector<2x32xf32>
    %118 = vector.extract_strided_slice %114 {offsets = [0, 96], sizes = [2, 32], strides = [1, 1]} : vector<2x128xf32> to vector<2x32xf32>
    %119 = arith.mulf %116, %103 : vector<2x32xf32>
    %120 = arith.mulf %115, %117 : vector<2x32xf32>
    %121 = arith.addf %119, %120 : vector<2x32xf32>
    %122 = math.tanh %121 : vector<2x32xf32>
    %123 = arith.mulf %118, %122 : vector<2x32xf32>
    %124 = vector.extract_strided_slice %20 {offsets = [5, 0, 0], sizes = [1, 2, 128], strides = [1, 1, 1]} : vector<8x2x128xf32> to vector<1x2x128xf32>
    %125 = vector.shape_cast %124 : vector<1x2x128xf32> to vector<2x128xf32>
    %cst_24 = arith.constant dense<0.000000e+00> : vector<2x128xf32>
    %126 = tpu.matmul %123, %21, %cst_24 {dimension_numbers = #tpu.dot_dimension_numbers<[1], [0], [0], [1], [0, 0, 1, 1], [], []>} : vector<2x32xf32>, vector<32x128xf32>, vector<2x128xf32> -> vector<2x128xf32>
    %127 = arith.addf %125, %126 : vector<2x128xf32>
    %128 = math.tanh %127 : vector<2x128xf32>
    %129 = vector.broadcast %30 : vector<1x128xf32> to vector<2x128xf32>
    %130 = arith.mulf %128, %129 : vector<2x128xf32>
    %131 = vector.broadcast %33 : vector<1x128xf32> to vector<2x128xf32>
    %132 = arith.addf %130, %131 : vector<2x128xf32>
    %133 = vector.extract_strided_slice %132 {offsets = [0, 0], sizes = [2, 32], strides = [1, 1]} : vector<2x128xf32> to vector<2x32xf32>
    %134 = vector.extract_strided_slice %132 {offsets = [0, 32], sizes = [2, 32], strides = [1, 1]} : vector<2x128xf32> to vector<2x32xf32>
    %135 = vector.extract_strided_slice %132 {offsets = [0, 64], sizes = [2, 32], strides = [1, 1]} : vector<2x128xf32> to vector<2x32xf32>
    %136 = vector.extract_strided_slice %132 {offsets = [0, 96], sizes = [2, 32], strides = [1, 1]} : vector<2x128xf32> to vector<2x32xf32>
    %137 = arith.mulf %134, %121 : vector<2x32xf32>
    %138 = arith.mulf %133, %135 : vector<2x32xf32>
    %139 = arith.addf %137, %138 : vector<2x32xf32>
    %140 = math.tanh %139 : vector<2x32xf32>
    %141 = arith.mulf %136, %140 : vector<2x32xf32>
    %142 = vector.extract_strided_slice %20 {offsets = [6, 0, 0], sizes = [1, 2, 128], strides = [1, 1, 1]} : vector<8x2x128xf32> to vector<1x2x128xf32>
    %143 = vector.shape_cast %142 : vector<1x2x128xf32> to vector<2x128xf32>
    %cst_25 = arith.constant dense<0.000000e+00> : vector<2x128xf32>
    %144 = tpu.matmul %141, %21, %cst_25 {dimension_numbers = #tpu.dot_dimension_numbers<[1], [0], [0], [1], [0, 0, 1, 1], [], []>} : vector<2x32xf32>, vector<32x128xf32>, vector<2x128xf32> -> vector<2x128xf32>
    %145 = arith.addf %143, %144 : vector<2x128xf32>
    %146 = math.tanh %145 : vector<2x128xf32>
    %147 = vector.broadcast %30 : vector<1x128xf32> to vector<2x128xf32>
    %148 = arith.mulf %146, %147 : vector<2x128xf32>
    %149 = vector.broadcast %33 : vector<1x128xf32> to vector<2x128xf32>
    %150 = arith.addf %148, %149 : vector<2x128xf32>
    %151 = vector.extract_strided_slice %150 {offsets = [0, 0], sizes = [2, 32], strides = [1, 1]} : vector<2x128xf32> to vector<2x32xf32>
    %152 = vector.extract_strided_slice %150 {offsets = [0, 32], sizes = [2, 32], strides = [1, 1]} : vector<2x128xf32> to vector<2x32xf32>
    %153 = vector.extract_strided_slice %150 {offsets = [0, 64], sizes = [2, 32], strides = [1, 1]} : vector<2x128xf32> to vector<2x32xf32>
    %154 = vector.extract_strided_slice %150 {offsets = [0, 96], sizes = [2, 32], strides = [1, 1]} : vector<2x128xf32> to vector<2x32xf32>
    %155 = arith.mulf %152, %139 : vector<2x32xf32>
    %156 = arith.mulf %151, %153 : vector<2x32xf32>
    %157 = arith.addf %155, %156 : vector<2x32xf32>
    %158 = math.tanh %157 : vector<2x32xf32>
    %159 = arith.mulf %154, %158 : vector<2x32xf32>
    %160 = vector.extract_strided_slice %20 {offsets = [7, 0, 0], sizes = [1, 2, 128], strides = [1, 1, 1]} : vector<8x2x128xf32> to vector<1x2x128xf32>
    %161 = vector.shape_cast %160 : vector<1x2x128xf32> to vector<2x128xf32>
    %cst_26 = arith.constant dense<0.000000e+00> : vector<2x128xf32>
    %162 = tpu.matmul %159, %21, %cst_26 {dimension_numbers = #tpu.dot_dimension_numbers<[1], [0], [0], [1], [0, 0, 1, 1], [], []>} : vector<2x32xf32>, vector<32x128xf32>, vector<2x128xf32> -> vector<2x128xf32>
    %163 = arith.addf %161, %162 : vector<2x128xf32>
    %164 = math.tanh %163 : vector<2x128xf32>
    %165 = vector.broadcast %30 : vector<1x128xf32> to vector<2x128xf32>
    %166 = arith.mulf %164, %165 : vector<2x128xf32>
    %167 = vector.broadcast %33 : vector<1x128xf32> to vector<2x128xf32>
    %168 = arith.addf %166, %167 : vector<2x128xf32>
    %169 = vector.extract_strided_slice %168 {offsets = [0, 0], sizes = [2, 32], strides = [1, 1]} : vector<2x128xf32> to vector<2x32xf32>
    %170 = vector.extract_strided_slice %168 {offsets = [0, 32], sizes = [2, 32], strides = [1, 1]} : vector<2x128xf32> to vector<2x32xf32>
    %171 = vector.extract_strided_slice %168 {offsets = [0, 64], sizes = [2, 32], strides = [1, 1]} : vector<2x128xf32> to vector<2x32xf32>
    %172 = vector.extract_strided_slice %168 {offsets = [0, 96], sizes = [2, 32], strides = [1, 1]} : vector<2x128xf32> to vector<2x32xf32>
    %173 = arith.mulf %170, %157 : vector<2x32xf32>
    %174 = arith.mulf %169, %171 : vector<2x32xf32>
    %175 = arith.addf %173, %174 : vector<2x32xf32>
    %176 = math.tanh %175 : vector<2x32xf32>
    %177 = arith.mulf %172, %176 : vector<2x32xf32>
    %178 = vector.shape_cast %51 : vector<2x32xf32> to vector<2x1x32xf32>
    %179 = vector.shape_cast %69 : vector<2x32xf32> to vector<2x1x32xf32>
    %180 = vector.shape_cast %87 : vector<2x32xf32> to vector<2x1x32xf32>
    %181 = vector.shape_cast %105 : vector<2x32xf32> to vector<2x1x32xf32>
    %182 = vector.shape_cast %123 : vector<2x32xf32> to vector<2x1x32xf32>
    %183 = vector.shape_cast %141 : vector<2x32xf32> to vector<2x1x32xf32>
    %184 = vector.shape_cast %159 : vector<2x32xf32> to vector<2x1x32xf32>
    %185 = vector.shape_cast %177 : vector<2x32xf32> to vector<2x1x32xf32>
    %186 = tpu.concatenate %178, %179, %180, %181, %182, %183, %184, %185 in 1 : vector<2x1x32xf32>, vector<2x1x32xf32>, vector<2x1x32xf32>, vector<2x1x32xf32>, vector<2x1x32xf32>, vector<2x1x32xf32>, vector<2x1x32xf32>, vector<2x1x32xf32> -> vector<2x8x32xf32>
    %187 = vector.shape_cast %186 : vector<2x8x32xf32> to vector<16x32xf32>
    %c0_27 = arith.constant 0 : index
    %c0_28 = arith.constant 0 : index
    %188 = vector.load %arg6[%c0_27, %c0_28] : memref<32x128xf32, #tpu.memory_space<vmem>>, vector<32x128xf32>
    %cst_29 = arith.constant dense<0.000000e+00> : vector<16x128xf32>
    %189 = tpu.matmul %187, %188, %cst_29 {dimension_numbers = #tpu.dot_dimension_numbers<[1], [0], [0], [1], [0, 0, 1, 1], [], []>} : vector<16x32xf32>, vector<32x128xf32>, vector<16x128xf32> -> vector<16x128xf32>
    %c0_30 = arith.constant 0 : index
    %c0_31 = arith.constant 0 : index
    %190 = vector.load %arg7[%c0_30, %c0_31] : memref<1x128xf32, #tpu.memory_space<vmem>>, vector<1x128xf32>
    %191 = vector.broadcast %190 : vector<1x128xf32> to vector<16x128xf32>
    %192 = arith.addf %189, %191 : vector<16x128xf32>
    %cst_32 = arith.constant dense<0.000000e+00> : vector<128xf32>
    %193 = vector.multi_reduction <add>, %192, %cst_32 [0] : vector<16x128xf32> to vector<128xf32>
    %194 = vector.shape_cast %193 : vector<128xf32> to vector<1x128xf32>
    %cst_33 = arith.constant 6.250000e-02 : f32
    %195 = vector.broadcast %cst_33 : f32 to vector<1x128xf32>
    %196 = arith.mulf %194, %195 : vector<1x128xf32>
    %197 = vector.broadcast %196 : vector<1x128xf32> to vector<16x128xf32>
    %198 = arith.subf %192, %197 : vector<16x128xf32>
    %199 = arith.mulf %198, %198 : vector<16x128xf32>
    %cst_34 = arith.constant dense<0.000000e+00> : vector<128xf32>
    %200 = vector.multi_reduction <add>, %199, %cst_34 [0] : vector<16x128xf32> to vector<128xf32>
    %201 = vector.shape_cast %200 : vector<128xf32> to vector<1x128xf32>
    %cst_35 = arith.constant 6.250000e-02 : f32
    %202 = vector.broadcast %cst_35 : f32 to vector<1x128xf32>
    %203 = arith.mulf %201, %202 : vector<1x128xf32>
    %cst_36 = arith.constant 9.99999974E-6 : f32
    %204 = vector.broadcast %cst_36 : f32 to vector<1x128xf32>
    %205 = arith.addf %203, %204 : vector<1x128xf32>
    %206 = math.rsqrt %205 : vector<1x128xf32>
    %207 = vector.broadcast %206 : vector<1x128xf32> to vector<16x128xf32>
    %208 = arith.mulf %198, %207 : vector<16x128xf32>
    %c0_37 = arith.constant 0 : index
    %c0_38 = arith.constant 0 : index
    %209 = vector.load %arg8[%c0_37, %c0_38] : memref<1x128xf32, #tpu.memory_space<vmem>>, vector<1x128xf32>
    %210 = vector.broadcast %209 : vector<1x128xf32> to vector<16x128xf32>
    %211 = arith.mulf %208, %210 : vector<16x128xf32>
    %c0_39 = arith.constant 0 : index
    %c0_40 = arith.constant 0 : index
    %212 = vector.load %arg9[%c0_39, %c0_40] : memref<1x128xf32, #tpu.memory_space<vmem>>, vector<1x128xf32>
    %213 = vector.broadcast %212 : vector<1x128xf32> to vector<16x128xf32>
    %214 = arith.addf %211, %213 : vector<16x128xf32>
    %cst_41 = arith.constant 0.000000e+00 : f32
    %215 = vector.broadcast %cst_41 : f32 to vector<16x128xf32>
    %216 = arith.maximumf %214, %215 : vector<16x128xf32>
    %c0_42 = arith.constant 0 : index
    %c0_43 = arith.constant 0 : index
    %217 = vector.load %arg10[%c0_42, %c0_43] : memref<128x128xf32, #tpu.memory_space<vmem>>, vector<128x128xf32>
    %cst_44 = arith.constant dense<0.000000e+00> : vector<16x128xf32>
    %218 = tpu.matmul %216, %217, %cst_44 {dimension_numbers = #tpu.dot_dimension_numbers<[1], [0], [0], [1], [0, 0, 1, 1], [], []>} : vector<16x128xf32>, vector<128x128xf32>, vector<16x128xf32> -> vector<16x128xf32>
    %c0_45 = arith.constant 0 : index
    %c0_46 = arith.constant 0 : index
    %219 = vector.load %arg11[%c0_45, %c0_46] : memref<1x128xf32, #tpu.memory_space<vmem>>, vector<1x128xf32>
    %220 = vector.broadcast %219 : vector<1x128xf32> to vector<16x128xf32>
    %221 = arith.addf %218, %220 : vector<16x128xf32>
    %c0_47 = arith.constant 0 : index
    %c0_48 = arith.constant 0 : index
    %222 = vector.load %arg12[%c0_47, %c0_48] : memref<16x128xf32, #tpu.memory_space<vmem>>, vector<16x128xf32>
    tpu.vector_store %arg12[%c0_47, %c0_48], %221 {strides = array<i32>} : memref<16x128xf32, #tpu.memory_space<vmem>>, vector<16x128xf32>,
    return
  }
}

</mosaic_0001>

<llo_original>
// kernel: tpu_custom_call.1
$region0: #{tpu_custom_call.1}
  #allocation0 [shape = 'u32[]', space=smem, size = 0x4, offset = 0x4, fixed_abs, tag = 'smem constant byte address 0x4 - core index']
  #allocation1 [shape = 'u32[144,128]{1,0:T(1,128)}', space=vmem, size = 0x12000, scoped, tag = 'internal scratch']
  %s0 = inlined_call_operand.hbm [shape: f32[16,16], index: 0, kind: input, shape index: {}]
  %s1 = inlined_call_operand.hbm [shape: f32[32,64], index: 1, kind: input, shape index: {}]
  %s2 = inlined_call_operand.vmem [shape: f32[1,64], index: 2, kind: input, shape index: {}]
  %s3 = inlined_call_operand.hbm [shape: f32[16,128], index: 3, kind: input, shape index: {}]
  %s4 = inlined_call_operand.hbm [shape: f32[32,128], index: 4, kind: input, shape index: {}]
  %s5 = inlined_call_operand.vmem [shape: f32[1,128], index: 5, kind: input, shape index: {}]
  %s6 = inlined_call_operand.hbm [shape: f32[32,128], index: 6, kind: input, shape index: {}]
  %s7 = inlined_call_operand.vmem [shape: f32[1,128], index: 7, kind: input, shape index: {}]
  %s8 = inlined_call_operand.vmem [shape: f32[1,128], index: 8, kind: input, shape index: {}]
  %s9 = inlined_call_operand.vmem [shape: f32[1,128], index: 9, kind: input, shape index: {}]
  %s10 = inlined_call_operand.hbm [shape: f32[128,128], index: 10, kind: input, shape index: {}]
  %s11 = inlined_call_operand.vmem [shape: f32[1,128], index: 11, kind: input, shape index: {}]
  %s12 = inlined_call_operand.hbm [shape: f32[16,128], index: 12, kind: output, shape index: {}]
  %s13 = sld [smem:[#allocation0]]
  $region82: #{tpu_custom_call.1} parent=0
    _
  %s15 = ssub.s32 1, %s13
  %s16 = scalar_select 0, %s15, %s13
  $region1: #{tpu_custom_call.1} parent=0
    #allocation2 [shape = 'u8[8192]{0}', space=vmem, size = 0x2000, scoped, tag = 'input window, operand 0, single buffered']
    #allocation3 [shape = 's32[1]{0}', space=sflag, size = 0x4, scoped, tag = 'scoped memory for tpu_custom_call.1']
    #allocation4 [shape = 's32[1]{0}', space=sflag, size = 0x4, scoped, tag = 'scoped memory for tpu_custom_call.1']
    #allocation5 [shape = 'u8[16384]{0}', space=vmem, size = 0x4000, scoped, tag = 'input window, operand 1, single buffered']
    #allocation6 [shape = 's32[1]{0}', space=sflag, size = 0x4, scoped, tag = 'scoped memory for tpu_custom_call.1']
    #allocation7 [shape = 'u8[8192]{0}', space=vmem, size = 0x2000, scoped, tag = 'input window, operand 3, single buffered']
    #allocation8 [shape = 'u8[16384]{0}', space=vmem, size = 0x4000, scoped, tag = 'input window, operand 4, single buffered']
    #allocation9 [shape = 's32[1]{0}', space=sflag, size = 0x4, scoped, tag = 'scoped memory for tpu_custom_call.1']
    #allocation10 [shape = 'u8[16384]{0}', space=vmem, size = 0x4000, scoped, tag = 'input window, operand 6, single buffered']
    #allocation11 [shape = 'u8[65536]{0}', space=vmem, size = 0x10000, scoped, tag = 'input window, operand 10, single buffered']
    #allocation12 [shape = 's32[1]{0}', space=sflag, size = 0x4, scoped, tag = 'scoped memory for tpu_custom_call.1']
    #allocation13 [shape = 'u8[8192]{0}', space=vmem, size = 0x2000, scoped, tag = 'output window, operand 0, single buffered']
    %17 = vsyncpa [#allocation3], 0
    %18 = vsyncpa [#allocation6], 0
    %19 = vsyncpa [#allocation9], 0
    %20 = vsyncpa [#allocation12], 0
    %21 = vsyncpa [#allocation4], 0
    // Predicated region
    $region2: #{tpu_custom_call.1} parent=1 // pred_check
      _
    $region3: #{tpu_custom_call.1} parent=1 // pred_check_branch
      %23 = sbr.rel (0) target = $region5
    $region4: #{tpu_custom_call.1} parent=1 // pred_region
      %s25 = ssub.s32 256, 256
      %26 = vsyncadd [#allocation3], %s25
      %s27 = sshll.u32 [#allocation2], 4
      %s28 = int_to_ptr.vmem [resolvable:$true] %s27
      %33 = dma.hbm_to_vmem [thread:$0]  %s0, 256, %s28, [#allocation3], 128, 128, 8
    $region5: #{tpu_custom_call.1} parent=1 // pred_fallthru
      _
    // Predicated region
    $region6: #{tpu_custom_call.1} parent=1 // pred_check
      _
    $region7: #{tpu_custom_call.1} parent=1 // pred_check_branch
      %35 = sbr.rel (0) target = $region9
    $region8: #{tpu_custom_call.1} parent=1 // pred_region
      %s37 = ssub.s32 512, 512
      %38 = vsyncadd [#allocation6], %s37
      %s39 = sshll.u32 [#allocation5], 4
      %s40 = int_to_ptr.vmem [resolvable:$true] %s39
      %45 = dma.hbm_to_vmem [thread:$0]  %s1, 512, %s40, [#allocation6], 128, 128, 8
    $region9: #{tpu_custom_call.1} parent=1 // pred_fallthru
      _
    // Predicated region
    $region10: #{tpu_custom_call.1} parent=1 // pred_check
      _
    $region11: #{tpu_custom_call.1} parent=1 // pred_check_branch
      %47 = sbr.rel (0) target = $region13
    $region12: #{tpu_custom_call.1} parent=1 // pred_region
      _
    $region13: #{tpu_custom_call.1} parent=1 // pred_fallthru
      _
    // Predicated region
    $region14: #{tpu_custom_call.1} parent=1 // pred_check
      _
    $region15: #{tpu_custom_call.1} parent=1 // pred_check_branch
      %49 = sbr.rel (0) target = $region17
    $region16: #{tpu_custom_call.1} parent=1 // pred_region
      %s51 = ssub.s32 256, 256
      %52 = vsyncadd [#allocation6], %s51
      %s53 = sshll.u32 [#allocation7], 4
      %s54 = int_to_ptr.vmem [resolvable:$true] %s53
      %59 = dma.hbm_to_vmem [thread:$0]  %s3, 256, %s54, [#allocation6], 128, 128, 8
    $region17: #{tpu_custom_call.1} parent=1 // pred_fallthru
      _
    // Predicated region
    $region18: #{tpu_custom_call.1} parent=1 // pred_check
      _
    $region19: #{tpu_custom_call.1} parent=1 // pred_check_branch
      %61 = sbr.rel (0) target = $region21
    $region20: #{tpu_custom_call.1} parent=1 // pred_region
      %s63 = ssub.s32 512, 512
      %64 = vsyncadd [#allocation9], %s63
      %s65 = sshll.u32 [#allocation8], 4
      %s66 = int_to_ptr.vmem [resolvable:$true] %s65
      %71 = dma.hbm_to_vmem [thread:$0]  %s4, 512, %s66, [#allocation9], 128, 128, 8
    $region21: #{tpu_custom_call.1} parent=1 // pred_fallthru
      _
    // Predicated region
    $region22: #{tpu_custom_call.1} parent=1 // pred_check
      _
    $region23: #{tpu_custom_call.1} parent=1 // pred_check_branch
      %73 = sbr.rel (0) target = $region25
    $region24: #{tpu_custom_call.1} parent=1 // pred_region
      _
    $region25: #{tpu_custom_call.1} parent=1 // pred_fallthru
      _
    // Predicated region
    $region26: #{tpu_custom_call.1} parent=1 // pred_check
      _
    $region27: #{tpu_custom_call.1} parent=1 // pred_check_branch
      %75 = sbr.rel (0) target = $region29
    $region28: #{tpu_custom_call.1} parent=1 // pred_region
      %s77 = ssub.s32 512, 512
      %78 = vsyncadd [#allocation9], %s77
      %s79 = sshll.u32 [#allocation10], 4
      %s80 = int_to_ptr.vmem [resolvable:$true] %s79
      %85 = dma.hbm_to_vmem [thread:$0]  %s6, 512, %s80, [#allocation9], 128, 128, 8
    $region29: #{tpu_custom_call.1} parent=1 // pred_fallthru
      _
    // Predicated region
    $region30: #{tpu_custom_call.1} parent=1 // pred_check
      _
    $region31: #{tpu_custom_call.1} parent=1 // pred_check_branch
      %87 = sbr.rel (0) target = $region33
    $region32: #{tpu_custom_call.1} parent=1 // pred_region
      _
    $region33: #{tpu_custom_call.1} parent=1 // pred_fallthru
      _
    // Predicated region
    $region34: #{tpu_custom_call.1} parent=1 // pred_check
      _
    $region35: #{tpu_custom_call.1} parent=1 // pred_check_branch
      %89 = sbr.rel (0) target = $region37
    $region36: #{tpu_custom_call.1} parent=1 // pred_region
      _
    $region37: #{tpu_custom_call.1} parent=1 // pred_fallthru
      _
    // Predicated region
    $region38: #{tpu_custom_call.1} parent=1 // pred_check
      _
    $region39: #{tpu_custom_call.1} parent=1 // pred_check_branch
      %91 = sbr.rel (0) target = $region41
    $region40: #{tpu_custom_call.1} parent=1 // pred_region
      _
    $region41: #{tpu_custom_call.1} parent=1 // pred_fallthru
      _
    // Predicated region
    $region42: #{tpu_custom_call.1} parent=1 // pred_check
      _
    $region43: #{tpu_custom_call.1} parent=1 // pred_check_branch
      %93 = sbr.rel (0) target = $region45
    $region44: #{tpu_custom_call.1} parent=1 // pred_region
      %s95 = ssub.s32 2048, 2048
      %96 = vsyncadd [#allocation12], %s95
      %s97 = sshll.u32 [#allocation11], 4
      %s98 = int_to_ptr.vmem [resolvable:$true] %s97
      %103 = dma.hbm_to_vmem [thread:$0]  %s10, 2048, %s98, [#allocation12], 128, 128, 8
    $region45: #{tpu_custom_call.1} parent=1 // pred_fallthru
      _
    // Predicated region
    $region46: #{tpu_custom_call.1} parent=1 // pred_check
      _
    $region47: #{tpu_custom_call.1} parent=1 // pred_check_branch
      %105 = sbr.rel (0) target = $region49
    $region48: #{tpu_custom_call.1} parent=1 // pred_region
      _
    $region49: #{tpu_custom_call.1} parent=1 // pred_fallthru
      _
    // Predicated region
    $region50: #{tpu_custom_call.1} parent=1 // pred_check
      _
    $region51: #{tpu_custom_call.1} parent=1 // pred_check_branch
      %107 = sbr.rel (0) target = $region53
    $region52: #{tpu_custom_call.1} parent=1 // pred_region
      %108 = dma.done [#allocation3], 256
    $region53: #{tpu_custom_call.1} parent=1 // pred_fallthru
      _
    // Predicated region
    $region54: #{tpu_custom_call.1} parent=1 // pred_check
      _
    $region55: #{tpu_custom_call.1} parent=1 // pred_check_branch
      %110 = sbr.rel (0) target = $region57
    $region56: #{tpu_custom_call.1} parent=1 // pred_region
      %111 = dma.done [#allocation6], 512
    $region57: #{tpu_custom_call.1} parent=1 // pred_fallthru
      _
    // Predicated region
    $region58: #{tpu_custom_call.1} parent=1 // pred_check
      _
    $region59: #{tpu_custom_call.1} parent=1 // pred_check_branch
      %113 = sbr.rel (0) target = $region61
    $region60: #{tpu_custom_call.1} parent=1 // pred_region
      %114 = dma.done [#allocation6], 256
    $region61: #{tpu_custom_call.1} parent=1 // pred_fallthru
      _
    // Predicated region
    $region62: #{tpu_custom_call.1} parent=1 // pred_check
      _
    $region63: #{tpu_custom_call.1} parent=1 // pred_check_branch
      %116 = sbr.rel (0) target = $region65
    $region64: #{tpu_custom_call.1} parent=1 // pred_region
      %117 = dma.done [#allocation9], 512
    $region65: #{tpu_custom_call.1} parent=1 // pred_fallthru
      _
    // Predicated region
    $region66: #{tpu_custom_call.1} parent=1 // pred_check
      _
    $region67: #{tpu_custom_call.1} parent=1 // pred_check_branch
      %119 = sbr.rel (0) target = $region69
    $region68: #{tpu_custom_call.1} parent=1 // pred_region
      %120 = dma.done [#allocation9], 512
    $region69: #{tpu_custom_call.1} parent=1 // pred_fallthru
      _
    // Predicated region
    $region70: #{tpu_custom_call.1} parent=1 // pred_check
      _
    $region71: #{tpu_custom_call.1} parent=1 // pred_check_branch
      %122 = sbr.rel (0) target = $region73
    $region72: #{tpu_custom_call.1} parent=1 // pred_region
      %123 = dma.done [#allocation12], 2048
    $region73: #{tpu_custom_call.1} parent=1 // pred_fallthru
      _
    %v124 = vld [vmem:[#allocation2] sm:$0xff]
    %v125 = vld [vmem:[#allocation2 + $0x8] sm:$0xff]
    %v128 = vcombine.high %v124, %v124
    %v130 = vunpack.c.l.s4 1983009808
    %v131 = vunpack.c.0.s8 %v130
    %v132 = vlaneseq
    %v133 = vshrl.u32 %v132, 7
    %v134 = vsub.s32 %v131, %v133
    %v135 = vrot.slane %v124, %v134
    %v137 = vunpack.c.l.s4 1983009808
    %v138 = vunpack.c.0.s8 %v137
    %v139 = vlaneseq
    %v140 = vshrl.u32 %v139, 7
    %v141 = vsub.s32 %v138, %v140
    %v142 = vrot.slane %v128, %v141
    %v143 = vcombine.high %v135, %v135
    %v144 = vcombine.high %v142, %v142
    %v145 = vcombine.high %v125, %v125
    %v147 = vunpack.c.l.s4 1983009808
    %v148 = vunpack.c.0.s8 %v147
    %v149 = vlaneseq
    %v150 = vshrl.u32 %v149, 7
    %v151 = vsub.s32 %v148, %v150
    %v152 = vrot.slane %v125, %v151
    %v154 = vunpack.c.l.s4 1983009808
    %v155 = vunpack.c.0.s8 %v154
    %v156 = vlaneseq
    %v157 = vshrl.u32 %v156, 7
    %v158 = vsub.s32 %v155, %v157
    %v159 = vrot.slane %v145, %v158
    %v160 = vcombine.high %v152, %v152
    %v161 = vcombine.high %v159, %v159
    %vm170 = vcmask 123904
    %v171 = vsel %vm170, %v135, -inf
    %v172 = vsel %vm170, %v143, -inf
    %v173 = vsel %vm170, %v142, -inf
    %v174 = vsel %vm170, %v144, -inf
    %v175 = vsel %vm170, %v152, -inf
    %v176 = vmax.f32 %v171, %v175
    %v177 = vsel %vm170, %v160, -inf
    %v178 = vmax.f32 %v172, %v177
    %v179 = vsel %vm170, %v159, -inf
    %v180 = vmax.f32 %v173, %v179
    %v181 = vsel %vm170, %v161, -inf
    %v182 = vmax.f32 %v174, %v181
    %v183 = vmax.f32 %v176, %v178
    %v184 = vmax.f32 %v180, %v182
    %v185 = vmax.f32 %v183, %v184
    %v186 = vsel %vm170, %v135, 0.0
    %v187 = vsel %vm170, %v143, 0.0
    %v188 = vadd.f32 %v186, %v187
    %v189 = vsel %vm170, %v142, 0.0
    %v190 = vadd.f32 %v188, %v189
    %v191 = vsel %vm170, %v144, 0.0
    %v192 = vadd.f32 %v190, %v191
    %v193 = vsel %vm170, %v152, 0.0
    %v194 = vadd.f32 %v192, %v193
    %v195 = vsel %vm170, %v160, 0.0
    %v196 = vadd.f32 %v194, %v195
    %v197 = vsel %vm170, %v159, 0.0
    %v198 = vadd.f32 %v196, %v197
    %v199 = vsel %vm170, %v161, 0.0
    %v200 = vadd.f32 %v198, %v199
    %v201 = vmul.f32 %v200, 0.125
    %203 = vrot.lane.b32.xlu0 %v201, 16
    %v204 = vpop.permute.xlu0 %203
    %vm206 = vcmask 130048
    %v207 = vsel %vm206, %v185, %v204
    %v208 = vld [vmem:[#allocation5] sm:$0xff]
    %v209 = vld [vmem:[#allocation5 + $0x8] sm:$0xff]
    %v210 = vld [vmem:[#allocation5 + $0x10] sm:$0xff]
    %v211 = vld [vmem:[#allocation5 + $0x18] sm:$0xff]
    %v212 = vld [vmem:[%s2] sm:$0x1]
    %v214 = vlaneseq
    %v215 = vshrl.u32 %v214, 7
    %v216 = vsub.s32 0, %v215
    %v217 = vrot.slane %v212, %v216
    %vm219 = vcmask 261120
    %v221 = vsel %vm219, %v207, 0
    %223 = vmatprep.subr.mxu0 0.0
    %224 = vmatpush1.msra.mxu0 %v208
    %225 = vmatprep.subr.mxu0 0.0
    %226 = vmatpush1.msra.mxu0 %v209
    %227 = vmatprep.subr.mxu0 0.0
    %228 = vmatpush1.msra.mxu0 %v210
    %229 = vmatprep.subr.mxu0 0.0
    %230 = vmatpush1.msra.mxu0 %v211
    %231 = vmatprep.subr.mxu0 0.0
    %232 = vmatpush1.msra.mxu0 0.0
    %233 = vmatprep.subr.mxu0 0.0
    %234 = vmatpush1.msra.mxu0 0.0
    %235 = vmatprep.subr.mxu0 0.0
    %236 = vmatpush1.msra.mxu0 0.0
    %237 = vmatprep.subr.mxu0 0.0
    %238 = vmatpush1.msra.mxu0 0.0
    %239 = vmatprep.subr.mxu0 0.0
    %240 = vmatpush1.msra.mxu0 0.0
    %241 = vmatprep.subr.mxu0 0.0
    %242 = vmatpush1.msra.mxu0 0.0
    %243 = vmatprep.subr.mxu0 0.0
    %244 = vmatpush1.msra.mxu0 0.0
    %245 = vmatprep.subr.mxu0 0.0
    %246 = vmatpush1.msra.mxu0 0.0
    %247 = vmatprep.subr.mxu0 0.0
    %248 = vmatpush1.msra.mxu0 0.0
    %249 = vmatprep.subr.mxu0 0.0
    %250 = vmatpush1.msra.mxu0 0.0
    %251 = vmatprep.subr.mxu0 0.0
    %252 = vmatpush1.msra.mxu0 0.0
    %253 = vmatprep.subr.mxu0 0.0
    %254 = vmatpush1.msra.mxu0 0.0
    %255 = vmatprep.subr.mxu0 0.0
    %256 = vmatpush1.msra.mxu0 0.0
    %257 = vmatprep.subr.mxu0 0.0
    %258 = vmatpush1.msra.mxu0 0.0
    %259 = vmatprep.subr.mxu0 0.0
    %260 = vmatpush1.msra.mxu0 0.0
    %261 = vmatprep.subr.mxu0 0.0
    %262 = vmatpush1.msra.mxu0 0.0
    %263 = vmatprep.subr.mxu0 0.0
    %264 = vmatpush1.msra.mxu0 0.0
    %265 = vmatprep.subr.mxu0 0.0
    %266 = vmatpush1.msra.mxu0 0.0
    %267 = vmatprep.subr.mxu0 0.0
    %268 = vmatpush1.msra.mxu0 0.0
    %269 = vmatprep.subr.mxu0 0.0
    %270 = vmatpush1.msra.mxu0 0.0
    %271 = vmatprep.subr.mxu0 0.0
    %272 = vmatpush1.msra.mxu0 0.0
    %273 = vmatprep.subr.mxu0 0.0
    %274 = vmatpush1.msra.mxu0 0.0
    %275 = vmatprep.subr.mxu0 0.0
    %276 = vmatpush1.msra.mxu0 0.0
    %277 = vmatprep.subr.mxu0 0.0
    %278 = vmatpush1.msra.mxu0 0.0
    %279 = vmatprep.subr.mxu0 0.0
    %280 = vmatpush1.msra.mxu0 0.0
    %281 = vmatprep.subr.mxu0 0.0
    %282 = vmatpush1.msra.mxu0 0.0
    %283 = vmatprep.subr.mxu0 0.0
    %284 = vmatpush1.msra.mxu0 0.0
    %285 = vmatprep.subr.mxu0 0.0
    %286 = vmatpush1.msra.mxu0 0.0
    %287 = vmatprep.mubr.f32.mxu0 0.0
    %288 = vmatmul.mubr.f32.gmra.mrb[0].mxu0 %v221
    %v289 = vpop.f32.mrb[0].mxu0
    %v290 = vadd.f32 %v217, %v289
    %v291 = vpop.f32.mrb[0].mxu0
    %292 = vdwg.mxu0
    %v293 = vtanh.pop %v290
    %v294 = vld [vmem:[#allocation7] sm:$0xff]
    %v295 = vld [vmem:[#allocation7 + $0x8] sm:$0xff]
    %v296 = vld [vmem:[%s5] sm:$0x1]
    %v298 = vlaneseq
    %v299 = vshrl.u32 %v298, 7
    %v300 = vsub.s32 0, %v299
    %v301 = vrot.slane %v296, %v300
    %v303 = vsel %vm206, %v124, 0
    %v305 = vsel %vm206, %v125, 0
    %307 = vmatprep.subr.mxu0 0.0
    %308 = vmatpush1.msra.mxu0 %v294
    %309 = vmatprep.subr.mxu0 0.0
    %310 = vmatpush1.msra.mxu0 %v295
    %311 = vmatprep.subr.mxu0 0.0
    %312 = vmatpush1.msra.mxu0 0.0
    %313 = vmatprep.subr.mxu0 0.0
    %314 = vmatpush1.msra.mxu0 0.0
    %315 = vmatprep.subr.mxu0 0.0
    %316 = vmatpush1.msra.mxu0 0.0
    %317 = vmatprep.subr.mxu0 0.0
    %318 = vmatpush1.msra.mxu0 0.0
    %319 = vmatprep.subr.mxu0 0.0
    %320 = vmatpush1.msra.mxu0 0.0
    %321 = vmatprep.subr.mxu0 0.0
    %322 = vmatpush1.msra.mxu0 0.0
    %323 = vmatprep.subr.mxu0 0.0
    %324 = vmatpush1.msra.mxu0 0.0
    %325 = vmatprep.subr.mxu0 0.0
    %326 = vmatpush1.msra.mxu0 0.0
    %327 = vmatprep.subr.mxu0 0.0
    %328 = vmatpush1.msra.mxu0 0.0
    %329 = vmatprep.subr.mxu0 0.0
    %330 = vmatpush1.msra.mxu0 0.0
    %331 = vmatprep.subr.mxu0 0.0
    %332 = vmatpush1.msra.mxu0 0.0
    %333 = vmatprep.subr.mxu0 0.0
    %334 = vmatpush1.msra.mxu0 0.0
    %335 = vmatprep.subr.mxu0 0.0
    %336 = vmatpush1.msra.mxu0 0.0
    %337 = vmatprep.subr.mxu0 0.0
    %338 = vmatpush1.msra.mxu0 0.0
    %339 = vmatprep.subr.mxu0 0.0
    %340 = vmatpush1.msra.mxu0 0.0
    %341 = vmatprep.subr.mxu0 0.0
    %342 = vmatpush1.msra.mxu0 0.0
    %343 = vmatprep.subr.mxu0 0.0
    %344 = vmatpush1.msra.mxu0 0.0
    %345 = vmatprep.subr.mxu0 0.0
    %346 = vmatpush1.msra.mxu0 0.0
    %347 = vmatprep.subr.mxu0 0.0
    %348 = vmatpush1.msra.mxu0 0.0
    %349 = vmatprep.subr.mxu0 0.0
    %350 = vmatpush1.msra.mxu0 0.0
    %351 = vmatprep.subr.mxu0 0.0
    %352 = vmatpush1.msra.mxu0 0.0
    %353 = vmatprep.subr.mxu0 0.0
    %354 = vmatpush1.msra.mxu0 0.0
    %355 = vmatprep.subr.mxu0 0.0
    %356 = vmatpush1.msra.mxu0 0.0
    %357 = vmatprep.subr.mxu0 0.0
    %358 = vmatpush1.msra.mxu0 0.0
    %359 = vmatprep.subr.mxu0 0.0
    %360 = vmatpush1.msra.mxu0 0.0
    %361 = vmatprep.subr.mxu0 0.0
    %362 = vmatpush1.msra.mxu0 0.0
    %363 = vmatprep.subr.mxu0 0.0
    %364 = vmatpush1.msra.mxu0 0.0
    %365 = vmatprep.subr.mxu0 0.0
    %366 = vmatpush1.msra.mxu0 0.0
    %367 = vmatprep.subr.mxu0 0.0
    %368 = vmatpush1.msra.mxu0 0.0
    %369 = vmatprep.subr.mxu0 0.0
    %370 = vmatpush1.msra.mxu0 0.0
    %371 = vmatprep.mubr.f32.mxu0 0.0
    %372 = vmatmul.mubr.f32.gmra.mrb[0].mxu0 %v303
    %v373 = vpop.f32.mrb[0].mxu0
    %v374 = vadd.f32 %v301, %v373
    %v375 = vpop.f32.mrb[0].mxu0
    %376 = vmatprep.mubr.f32.mxu0 0.0
    %377 = vmatmul.mubr.f32.gmra.mrb[0].mxu0 %v305
    %v378 = vpop.f32.mrb[0].mxu0
    %v379 = vadd.f32 %v301, %v378
    %v380 = vpop.f32.mrb[0].mxu0
    %381 = vdwg.mxu0
    %v384 = vcombine.high %v374, %v374
    %v386 = vunpack.c.l.s4 1983009808
    %v387 = vunpack.c.0.s8 %v386
    %v388 = vlaneseq
    %v389 = vshrl.u32 %v388, 7
    %v390 = vsub.s32 %v387, %v389
    %v391 = vrot.slane %v374, %v390
    %v393 = vunpack.c.l.s4 1983009808
    %v394 = vunpack.c.0.s8 %v393
    %v395 = vlaneseq
    %v396 = vshrl.u32 %v395, 7
    %v397 = vsub.s32 %v394, %v396
    %v398 = vrot.slane %v384, %v397
    %v399 = vcombine.high %v391, %v391
    %v400 = vcombine.high %v398, %v398
    %v401 = vcombine.high %v379, %v379
    %v403 = vunpack.c.l.s4 1983009808
    %v404 = vunpack.c.0.s8 %v403
    %v405 = vlaneseq
    %v406 = vshrl.u32 %v405, 7
    %v407 = vsub.s32 %v404, %v406
    %v408 = vrot.slane %v379, %v407
    %v410 = vunpack.c.l.s4 1983009808
    %v411 = vunpack.c.0.s8 %v410
    %v412 = vlaneseq
    %v413 = vshrl.u32 %v412, 7
    %v414 = vsub.s32 %v411, %v413
    %v415 = vrot.slane %v401, %v414
    %v416 = vcombine.high %v408, %v408
    %v417 = vcombine.high %v415, %v415
    %v426 = vld [vmem:[#allocation8] sm:$0xff]
    %v427 = vld [vmem:[#allocation8 + $0x8] sm:$0xff]
    %v428 = vld [vmem:[#allocation8 + $0x10] sm:$0xff]
    %v429 = vld [vmem:[#allocation8 + $0x18] sm:$0xff]
    %v430 = vlaneseq
    %v431 = vand.u32 %v430, 127
    %vm432 = vcmp.lt.s32.totalorder %v431, 64
    %vm433 = vcmp.ge.s32.totalorder %v431, 96
    %vm434 = vmor %vm432, %vm433
    %v435 = vsel %vm434, 0.5, 1.0
    %v436 = vsel %vm434, 0.5, 0.0
    %v438 = vsel %vm219, %v293, 0
    %440 = vmatprep.subr.mxu0 0.0
    %441 = vmatpush1.msra.mxu0 %v426
    %442 = vmatprep.subr.mxu0 0.0
    %443 = vmatpush1.msra.mxu0 %v427
    %444 = vmatprep.subr.mxu0 0.0
    %445 = vmatpush1.msra.mxu0 %v428
    %446 = vmatprep.subr.mxu0 0.0
    %447 = vmatpush1.msra.mxu0 %v429
    %448 = vmatprep.subr.mxu0 0.0
    %449 = vmatpush1.msra.mxu0 0.0
    %450 = vmatprep.subr.mxu0 0.0
    %451 = vmatpush1.msra.mxu0 0.0
    %452 = vmatprep.subr.mxu0 0.0
    %453 = vmatpush1.msra.mxu0 0.0
    %454 = vmatprep.subr.mxu0 0.0
    %455 = vmatpush1.msra.mxu0 0.0
    %456 = vmatprep.subr.mxu0 0.0
    %457 = vmatpush1.msra.mxu0 0.0
    %458 = vmatprep.subr.mxu0 0.0
    %459 = vmatpush1.msra.mxu0 0.0
    %460 = vmatprep.subr.mxu0 0.0
    %461 = vmatpush1.msra.mxu0 0.0
    %462 = vmatprep.subr.mxu0 0.0
    %463 = vmatpush1.msra.mxu0 0.0
    %464 = vmatprep.subr.mxu0 0.0
    %465 = vmatpush1.msra.mxu0 0.0
    %466 = vmatprep.subr.mxu0 0.0
    %467 = vmatpush1.msra.mxu0 0.0
    %468 = vmatprep.subr.mxu0 0.0
    %469 = vmatpush1.msra.mxu0 0.0
    %470 = vmatprep.subr.mxu0 0.0
    %471 = vmatpush1.msra.mxu0 0.0
    %472 = vmatprep.subr.mxu0 0.0
    %473 = vmatpush1.msra.mxu0 0.0
    %474 = vmatprep.subr.mxu0 0.0
    %475 = vmatpush1.msra.mxu0 0.0
    %476 = vmatprep.subr.mxu0 0.0
    %477 = vmatpush1.msra.mxu0 0.0
    %478 = vmatprep.subr.mxu0 0.0
    %479 = vmatpush1.msra.mxu0 0.0
    %480 = vmatprep.subr.mxu0 0.0
    %481 = vmatpush1.msra.mxu0 0.0
    %482 = vmatprep.subr.mxu0 0.0
    %483 = vmatpush1.msra.mxu0 0.0
    %484 = vmatprep.subr.mxu0 0.0
    %485 = vmatpush1.msra.mxu0 0.0
    %486 = vmatprep.subr.mxu0 0.0
    %487 = vmatpush1.msra.mxu0 0.0
    %488 = vmatprep.subr.mxu0 0.0
    %489 = vmatpush1.msra.mxu0 0.0
    %490 = vmatprep.subr.mxu0 0.0
    %491 = vmatpush1.msra.mxu0 0.0
    %492 = vmatprep.subr.mxu0 0.0
    %493 = vmatpush1.msra.mxu0 0.0
    %494 = vmatprep.subr.mxu0 0.0
    %495 = vmatpush1.msra.mxu0 0.0
    %496 = vmatprep.subr.mxu0 0.0
    %497 = vmatpush1.msra.mxu0 0.0
    %498 = vmatprep.subr.mxu0 0.0
    %499 = vmatpush1.msra.mxu0 0.0
    %500 = vmatprep.subr.mxu0 0.0
    %501 = vmatpush1.msra.mxu0 0.0
    %502 = vmatprep.subr.mxu0 0.0
    %503 = vmatpush1.msra.mxu0 0.0
    %504 = vmatprep.mubr.f32.mxu0 0.0
    %505 = vmatmul.mubr.f32.gmra.mrb[0].mxu0 %v438
    %v506 = vpop.f32.mrb[0].mxu0
    %v507 = vadd.f32 0.0, %v506
    %v508 = vpop.f32.mrb[0].mxu0
    %509 = vdwg.mxu0
    %v510 = vadd.f32 %v391, %v507
    %v511 = vtanh.pop %v510
    %v512 = vmul.f32 %v511, %v435
    %v513 = vadd.f32 %v512, %v436
    %v514 = vmul.f32 %v513, %v293
    %516 = vrot.lane.b32.xlu0 %v513, 64
    %v517 = vpop.permute.xlu0 %516
    %v519 = vmul.f32 %v513, %v517
    %521 = vrot.lane.b32.xlu0 %v519, 32
    %v522 = vpop.permute.xlu0 %521
    %v524 = vadd.f32 %v514, %v522
    %v525 = vtanh.pop %v524
    %527 = vrot.lane.b32.xlu0 %v525, 64
    %v528 = vpop.permute.xlu0 %527
    %v530 = vmul.f32 %v513, %v528
    %v533 = vunpack.c.l.s4 1983009808
    %v534 = vunpack.c.0.s8 %v533
    %v535 = vlaneseq
    %v536 = vshrl.u32 %v535, 7
    %v537 = vsub.s32 %v534, %v536
    %v538 = vrot.slane %v530, %v537
    %539 = vrot.lane.b32.xlu0 %v538, 32
    %v540 = vpop.permute.xlu0 %539
    %v541 = vsel %vm219, %v540, 0
    %543 = vmatprep.subr.mxu0 0.0
    %544 = vmatpush1.msra.mxu0 %v426
    %545 = vmatprep.subr.mxu0 0.0
    %546 = vmatpush1.msra.mxu0 %v427
    %547 = vmatprep.subr.mxu0 0.0
    %548 = vmatpush1.msra.mxu0 %v428
    %549 = vmatprep.subr.mxu0 0.0
    %550 = vmatpush1.msra.mxu0 %v429
    %551 = vmatprep.subr.mxu0 0.0
    %552 = vmatpush1.msra.mxu0 0.0
    %553 = vmatprep.subr.mxu0 0.0
    %554 = vmatpush1.msra.mxu0 0.0
    %555 = vmatprep.subr.mxu0 0.0
    %556 = vmatpush1.msra.mxu0 0.0
    %557 = vmatprep.subr.mxu0 0.0
    %558 = vmatpush1.msra.mxu0 0.0
    %559 = vmatprep.subr.mxu0 0.0
    %560 = vmatpush1.msra.mxu0 0.0
    %561 = vmatprep.subr.mxu0 0.0
    %562 = vmatpush1.msra.mxu0 0.0
    %563 = vmatprep.subr.mxu0 0.0
    %564 = vmatpush1.msra.mxu0 0.0
    %565 = vmatprep.subr.mxu0 0.0
    %566 = vmatpush1.msra.mxu0 0.0
    %567 = vmatprep.subr.mxu0 0.0
    %568 = vmatpush1.msra.mxu0 0.0
    %569 = vmatprep.subr.mxu0 0.0
    %570 = vmatpush1.msra.mxu0 0.0
    %571 = vmatprep.subr.mxu0 0.0
    %572 = vmatpush1.msra.mxu0 0.0
    %573 = vmatprep.subr.mxu0 0.0
    %574 = vmatpush1.msra.mxu0 0.0
    %575 = vmatprep.subr.mxu0 0.0
    %576 = vmatpush1.msra.mxu0 0.0
    %577 = vmatprep.subr.mxu0 0.0
    %578 = vmatpush1.msra.mxu0 0.0
    %579 = vmatprep.subr.mxu0 0.0
    %580 = vmatpush1.msra.mxu0 0.0
    %581 = vmatprep.subr.mxu0 0.0
    %582 = vmatpush1.msra.mxu0 0.0
    %583 = vmatprep.subr.mxu0 0.0
    %584 = vmatpush1.msra.mxu0 0.0
    %585 = vmatprep.subr.mxu0 0.0
    %586 = vmatpush1.msra.mxu0 0.0
    %587 = vmatprep.subr.mxu0 0.0
    %588 = vmatpush1.msra.mxu0 0.0
    %589 = vmatprep.subr.mxu0 0.0
    %590 = vmatpush1.msra.mxu0 0.0
    %591 = vmatprep.subr.mxu0 0.0
    %592 = vmatpush1.msra.mxu0 0.0
    %593 = vmatprep.subr.mxu0 0.0
    %594 = vmatpush1.msra.mxu0 0.0
    %595 = vmatprep.subr.mxu0 0.0
    %596 = vmatpush1.msra.mxu0 0.0
    %597 = vmatprep.subr.mxu0 0.0
    %598 = vmatpush1.msra.mxu0 0.0
    %599 = vmatprep.subr.mxu0 0.0
    %600 = vmatpush1.msra.mxu0 0.0
    %601 = vmatprep.subr.mxu0 0.0
    %602 = vmatpush1.msra.mxu0 0.0
    %603 = vmatprep.subr.mxu0 0.0
    %604 = vmatpush1.msra.mxu0 0.0
    %605 = vmatprep.subr.mxu0 0.0
    %606 = vmatpush1.msra.mxu0 0.0
    %607 = vmatprep.mubr.f32.mxu0 0.0
    %608 = vmatmul.mubr.f32.gmra.mrb[0].mxu0 %v541
    %v609 = vpop.f32.mrb[0].mxu0
    %v610 = vadd.f32 0.0, %v609
    %v611 = vpop.f32.mrb[0].mxu0
    %612 = vdwg.mxu0
    %v613 = vadd.f32 %v399, %v610
    %v614 = vtanh.pop %v613
    %v615 = vmul.f32 %v614, %v435
    %v616 = vadd.f32 %v615, %v436
    %v617 = vmul.f32 %v616, %v524
    %619 = vrot.lane.b32.xlu0 %v616, 64
    %v620 = vpop.permute.xlu0 %619
    %v622 = vmul.f32 %v616, %v620
    %624 = vrot.lane.b32.xlu0 %v622, 32
    %v625 = vpop.permute.xlu0 %624
    %v627 = vadd.f32 %v617, %v625
    %v628 = vtanh.pop %v627
    %630 = vrot.lane.b32.xlu0 %v628, 64
    %v631 = vpop.permute.xlu0 %630
    %v633 = vmul.f32 %v616, %v631
    %v636 = vunpack.c.l.s4 1983009808
    %v637 = vunpack.c.0.s8 %v636
    %v638 = vlaneseq
    %v639 = vshrl.u32 %v638, 7
    %v640 = vsub.s32 %v637, %v639
    %v641 = vrot.slane %v633, %v640
    %642 = vrot.lane.b32.xlu0 %v641, 32
    %v643 = vpop.permute.xlu0 %642
    %v644 = vsel %vm219, %v643, 0
    %646 = vmatprep.subr.mxu0 0.0
    %647 = vmatpush1.msra.mxu0 %v426
    %648 = vmatprep.subr.mxu0 0.0
    %649 = vmatpush1.msra.mxu0 %v427
    %650 = vmatprep.subr.mxu0 0.0
    %651 = vmatpush1.msra.mxu0 %v428
    %652 = vmatprep.subr.mxu0 0.0
    %653 = vmatpush1.msra.mxu0 %v429
    %654 = vmatprep.subr.mxu0 0.0
    %655 = vmatpush1.msra.mxu0 0.0
    %656 = vmatprep.subr.mxu0 0.0
    %657 = vmatpush1.msra.mxu0 0.0
    %658 = vmatprep.subr.mxu0 0.0
    %659 = vmatpush1.msra.mxu0 0.0
    %660 = vmatprep.subr.mxu0 0.0
    %661 = vmatpush1.msra.mxu0 0.0
    %662 = vmatprep.subr.mxu0 0.0
    %663 = vmatpush1.msra.mxu0 0.0
    %664 = vmatprep.subr.mxu0 0.0
    %665 = vmatpush1.msra.mxu0 0.0
    %666 = vmatprep.subr.mxu0 0.0
    %667 = vmatpush1.msra.mxu0 0.0
    %668 = vmatprep.subr.mxu0 0.0
    %669 = vmatpush1.msra.mxu0 0.0
    %670 = vmatprep.subr.mxu0 0.0
    %671 = vmatpush1.msra.mxu0 0.0
    %672 = vmatprep.subr.mxu0 0.0
    %673 = vmatpush1.msra.mxu0 0.0
    %674 = vmatprep.subr.mxu0 0.0
    %675 = vmatpush1.msra.mxu0 0.0
    %676 = vmatprep.subr.mxu0 0.0
    %677 = vmatpush1.msra.mxu0 0.0
    %678 = vmatprep.subr.mxu0 0.0
    %679 = vmatpush1.msra.mxu0 0.0
    %680 = vmatprep.subr.mxu0 0.0
    %681 = vmatpush1.msra.mxu0 0.0
    %682 = vmatprep.subr.mxu0 0.0
    %683 = vmatpush1.msra.mxu0 0.0
    %684 = vmatprep.subr.mxu0 0.0
    %685 = vmatpush1.msra.mxu0 0.0
    %686 = vmatprep.subr.mxu0 0.0
    %687 = vmatpush1.msra.mxu0 0.0
    %688 = vmatprep.subr.mxu0 0.0
    %689 = vmatpush1.msra.mxu0 0.0
    %690 = vmatprep.subr.mxu0 0.0
    %691 = vmatpush1.msra.mxu0 0.0
    %692 = vmatprep.subr.mxu0 0.0
    %693 = vmatpush1.msra.mxu0 0.0
    %694 = vmatprep.subr.mxu0 0.0
    %695 = vmatpush1.msra.mxu0 0.0
    %696 = vmatprep.subr.mxu0 0.0
    %697 = vmatpush1.msra.mxu0 0.0
    %698 = vmatprep.subr.mxu0 0.0
    %699 = vmatpush1.msra.mxu0 0.0
    %700 = vmatprep.subr.mxu0 0.0
    %701 = vmatpush1.msra.mxu0 0.0
    %702 = vmatprep.subr.mxu0 0.0
    %703 = vmatpush1.msra.mxu0 0.0
    %704 = vmatprep.subr.mxu0 0.0
    %705 = vmatpush1.msra.mxu0 0.0
    %706 = vmatprep.subr.mxu0 0.0
    %707 = vmatpush1.msra.mxu0 0.0
    %708 = vmatprep.subr.mxu0 0.0
    %709 = vmatpush1.msra.mxu0 0.0
    %710 = vmatprep.mubr.f32.mxu0 0.0
    %711 = vmatmul.mubr.f32.gmra.mrb[0].mxu0 %v644
    %v712 = vpop.f32.mrb[0].mxu0
    %v713 = vadd.f32 0.0, %v712
    %v714 = vpop.f32.mrb[0].mxu0
    %715 = vdwg.mxu0
    %v716 = vadd.f32 %v398, %v713
    %v717 = vtanh.pop %v716
    %v718 = vmul.f32 %v717, %v435
    %v719 = vadd.f32 %v718, %v436
    %v720 = vmul.f32 %v719, %v627
    %722 = vrot.lane.b32.xlu0 %v719, 64
    %v723 = vpop.permute.xlu0 %722
    %v725 = vmul.f32 %v719, %v723
    %727 = vrot.lane.b32.xlu0 %v725, 32
    %v728 = vpop.permute.xlu0 %727
    %v730 = vadd.f32 %v720, %v728
    %v731 = vtanh.pop %v730
    %733 = vrot.lane.b32.xlu0 %v731, 64
    %v734 = vpop.permute.xlu0 %733
    %v736 = vmul.f32 %v719, %v734
    %v739 = vunpack.c.l.s4 1983009808
    %v740 = vunpack.c.0.s8 %v739
    %v741 = vlaneseq
    %v742 = vshrl.u32 %v741, 7
    %v743 = vsub.s32 %v740, %v742
    %v744 = vrot.slane %v736, %v743
    %745 = vrot.lane.b32.xlu0 %v744, 32
    %v746 = vpop.permute.xlu0 %745
    %v747 = vsel %vm219, %v746, 0
    %749 = vmatprep.subr.mxu0 0.0
    %750 = vmatpush1.msra.mxu0 %v426
    %751 = vmatprep.subr.mxu0 0.0
    %752 = vmatpush1.msra.mxu0 %v427
    %753 = vmatprep.subr.mxu0 0.0
    %754 = vmatpush1.msra.mxu0 %v428
    %755 = vmatprep.subr.mxu0 0.0
    %756 = vmatpush1.msra.mxu0 %v429
    %757 = vmatprep.subr.mxu0 0.0
    %758 = vmatpush1.msra.mxu0 0.0
    %759 = vmatprep.subr.mxu0 0.0
    %760 = vmatpush1.msra.mxu0 0.0
    %761 = vmatprep.subr.mxu0 0.0
    %762 = vmatpush1.msra.mxu0 0.0
    %763 = vmatprep.subr.mxu0 0.0
    %764 = vmatpush1.msra.mxu0 0.0
    %765 = vmatprep.subr.mxu0 0.0
    %766 = vmatpush1.msra.mxu0 0.0
    %767 = vmatprep.subr.mxu0 0.0
    %768 = vmatpush1.msra.mxu0 0.0
    %769 = vmatprep.subr.mxu0 0.0
    %770 = vmatpush1.msra.mxu0 0.0
    %771 = vmatprep.subr.mxu0 0.0
    %772 = vmatpush1.msra.mxu0 0.0
    %773 = vmatprep.subr.mxu0 0.0
    %774 = vmatpush1.msra.mxu0 0.0
    %775 = vmatprep.subr.mxu0 0.0
    %776 = vmatpush1.msra.mxu0 0.0
    %777 = vmatprep.subr.mxu0 0.0
    %778 = vmatpush1.msra.mxu0 0.0
    %779 = vmatprep.subr.mxu0 0.0
    %780 = vmatpush1.msra.mxu0 0.0
    %781 = vmatprep.subr.mxu0 0.0
    %782 = vmatpush1.msra.mxu0 0.0
    %783 = vmatprep.subr.mxu0 0.0
    %784 = vmatpush1.msra.mxu0 0.0
    %785 = vmatprep.subr.mxu0 0.0
    %786 = vmatpush1.msra.mxu0 0.0
    %787 = vmatprep.subr.mxu0 0.0
    %788 = vmatpush1.msra.mxu0 0.0
    %789 = vmatprep.subr.mxu0 0.0
    %790 = vmatpush1.msra.mxu0 0.0
    %791 = vmatprep.subr.mxu0 0.0
    %792 = vmatpush1.msra.mxu0 0.0
    %793 = vmatprep.subr.mxu0 0.0
    %794 = vmatpush1.msra.mxu0 0.0
    %795 = vmatprep.subr.mxu0 0.0
    %796 = vmatpush1.msra.mxu0 0.0
    %797 = vmatprep.subr.mxu0 0.0
    %798 = vmatpush1.msra.mxu0 0.0
    %799 = vmatprep.subr.mxu0 0.0
    %800 = vmatpush1.msra.mxu0 0.0
    %801 = vmatprep.subr.mxu0 0.0
    %802 = vmatpush1.msra.mxu0 0.0
    %803 = vmatprep.subr.mxu0 0.0
    %804 = vmatpush1.msra.mxu0 0.0
    %805 = vmatprep.subr.mxu0 0.0
    %806 = vmatpush1.msra.mxu0 0.0
    %807 = vmatprep.subr.mxu0 0.0
    %808 = vmatpush1.msra.mxu0 0.0
    %809 = vmatprep.subr.mxu0 0.0
    %810 = vmatpush1.msra.mxu0 0.0
    %811 = vmatprep.subr.mxu0 0.0
    %812 = vmatpush1.msra.mxu0 0.0
    %813 = vmatprep.mubr.f32.mxu0 0.0
    %814 = vmatmul.mubr.f32.gmra.mrb[0].mxu0 %v747
    %v815 = vpop.f32.mrb[0].mxu0
    %v816 = vadd.f32 0.0, %v815
    %v817 = vpop.f32.mrb[0].mxu0
    %818 = vdwg.mxu0
    %v819 = vadd.f32 %v400, %v816
    %v820 = vtanh.pop %v819
    %v821 = vmul.f32 %v820, %v435
    %v822 = vadd.f32 %v821, %v436
    %v823 = vmul.f32 %v822, %v730
    %825 = vrot.lane.b32.xlu0 %v822, 64
    %v826 = vpop.permute.xlu0 %825
    %v828 = vmul.f32 %v822, %v826
    %830 = vrot.lane.b32.xlu0 %v828, 32
    %v831 = vpop.permute.xlu0 %830
    %v833 = vadd.f32 %v823, %v831
    %v834 = vtanh.pop %v833
    %836 = vrot.lane.b32.xlu0 %v834, 64
    %v837 = vpop.permute.xlu0 %836
    %v839 = vmul.f32 %v822, %v837
    %v842 = vunpack.c.l.s4 1983009808
    %v843 = vunpack.c.0.s8 %v842
    %v844 = vlaneseq
    %v845 = vshrl.u32 %v844, 7
    %v846 = vsub.s32 %v843, %v845
    %v847 = vrot.slane %v839, %v846
    %848 = vrot.lane.b32.xlu0 %v847, 32
    %v849 = vpop.permute.xlu0 %848
    %v850 = vsel %vm219, %v849, 0
    %852 = vmatprep.subr.mxu0 0.0
    %853 = vmatpush1.msra.mxu0 %v426
    %854 = vmatprep.subr.mxu0 0.0
    %855 = vmatpush1.msra.mxu0 %v427
    %856 = vmatprep.subr.mxu0 0.0
    %857 = vmatpush1.msra.mxu0 %v428
    %858 = vmatprep.subr.mxu0 0.0
    %859 = vmatpush1.msra.mxu0 %v429
    %860 = vmatprep.subr.mxu0 0.0
    %861 = vmatpush1.msra.mxu0 0.0
    %862 = vmatprep.subr.mxu0 0.0
    %863 = vmatpush1.msra.mxu0 0.0
    %864 = vmatprep.subr.mxu0 0.0
    %865 = vmatpush1.msra.mxu0 0.0
    %866 = vmatprep.subr.mxu0 0.0
    %867 = vmatpush1.msra.mxu0 0.0
    %868 = vmatprep.subr.mxu0 0.0
    %869 = vmatpush1.msra.mxu0 0.0
    %870 = vmatprep.subr.mxu0 0.0
    %871 = vmatpush1.msra.mxu0 0.0
    %872 = vmatprep.subr.mxu0 0.0
    %873 = vmatpush1.msra.mxu0 0.0
    %874 = vmatprep.subr.mxu0 0.0
    %875 = vmatpush1.msra.mxu0 0.0
    %876 = vmatprep.subr.mxu0 0.0
    %877 = vmatpush1.msra.mxu0 0.0
    %878 = vmatprep.subr.mxu0 0.0
    %879 = vmatpush1.msra.mxu0 0.0
    %880 = vmatprep.subr.mxu0 0.0
    %881 = vmatpush1.msra.mxu0 0.0
    %882 = vmatprep.subr.mxu0 0.0
    %883 = vmatpush1.msra.mxu0 0.0
    %884 = vmatprep.subr.mxu0 0.0
    %885 = vmatpush1.msra.mxu0 0.0
    %886 = vmatprep.subr.mxu0 0.0
    %887 = vmatpush1.msra.mxu0 0.0
    %888 = vmatprep.subr.mxu0 0.0
    %889 = vmatpush1.msra.mxu0 0.0
    %890 = vmatprep.subr.mxu0 0.0
    %891 = vmatpush1.msra.mxu0 0.0
    %892 = vmatprep.subr.mxu0 0.0
    %893 = vmatpush1.msra.mxu0 0.0
    %894 = vmatprep.subr.mxu0 0.0
    %895 = vmatpush1.msra.mxu0 0.0
    %896 = vmatprep.subr.mxu0 0.0
    %897 = vmatpush1.msra.mxu0 0.0
    %898 = vmatprep.subr.mxu0 0.0
    %899 = vmatpush1.msra.mxu0 0.0
    %900 = vmatprep.subr.mxu0 0.0
    %901 = vmatpush1.msra.mxu0 0.0
    %902 = vmatprep.subr.mxu0 0.0
    %903 = vmatpush1.msra.mxu0 0.0
    %904 = vmatprep.subr.mxu0 0.0
    %905 = vmatpush1.msra.mxu0 0.0
    %906 = vmatprep.subr.mxu0 0.0
    %907 = vmatpush1.msra.mxu0 0.0
    %908 = vmatprep.subr.mxu0 0.0
    %909 = vmatpush1.msra.mxu0 0.0
    %910 = vmatprep.subr.mxu0 0.0
    %911 = vmatpush1.msra.mxu0 0.0
    %912 = vmatprep.subr.mxu0 0.0
    %913 = vmatpush1.msra.mxu0 0.0
    %914 = vmatprep.subr.mxu0 0.0
    %915 = vmatpush1.msra.mxu0 0.0
    %916 = vmatprep.mubr.f32.mxu0 0.0
    %917 = vmatmul.mubr.f32.gmra.mrb[0].mxu0 %v850
    %v918 = vpop.f32.mrb[0].mxu0
    %v919 = vadd.f32 0.0, %v918
    %v920 = vpop.f32.mrb[0].mxu0
    %921 = vdwg.mxu0
    %v922 = vadd.f32 %v408, %v919
    %v923 = vtanh.pop %v922
    %v924 = vmul.f32 %v923, %v435
    %v925 = vadd.f32 %v924, %v436
    %v926 = vmul.f32 %v925, %v833
    %928 = vrot.lane.b32.xlu0 %v925, 64
    %v929 = vpop.permute.xlu0 %928
    %v931 = vmul.f32 %v925, %v929
    %933 = vrot.lane.b32.xlu0 %v931, 32
    %v934 = vpop.permute.xlu0 %933
    %v936 = vadd.f32 %v926, %v934
    %v937 = vtanh.pop %v936
    %939 = vrot.lane.b32.xlu0 %v937, 64
    %v940 = vpop.permute.xlu0 %939
    %v942 = vmul.f32 %v925, %v940
    %v945 = vunpack.c.l.s4 1983009808
    %v946 = vunpack.c.0.s8 %v945
    %v947 = vlaneseq
    %v948 = vshrl.u32 %v947, 7
    %v949 = vsub.s32 %v946, %v948
    %v950 = vrot.slane %v942, %v949
    %951 = vrot.lane.b32.xlu0 %v950, 32
    %v952 = vpop.permute.xlu0 %951
    %v953 = vsel %vm219, %v952, 0
    %955 = vmatprep.subr.mxu0 0.0
    %956 = vmatpush1.msra.mxu0 %v426
    %957 = vmatprep.subr.mxu0 0.0
    %958 = vmatpush1.msra.mxu0 %v427
    %959 = vmatprep.subr.mxu0 0.0
    %960 = vmatpush1.msra.mxu0 %v428
    %961 = vmatprep.subr.mxu0 0.0
    %962 = vmatpush1.msra.mxu0 %v429
    %963 = vmatprep.subr.mxu0 0.0
    %964 = vmatpush1.msra.mxu0 0.0
    %965 = vmatprep.subr.mxu0 0.0
    %966 = vmatpush1.msra.mxu0 0.0
    %967 = vmatprep.subr.mxu0 0.0
    %968 = vmatpush1.msra.mxu0 0.0
    %969 = vmatprep.subr.mxu0 0.0
    %970 = vmatpush1.msra.mxu0 0.0
    %971 = vmatprep.subr.mxu0 0.0
    %972 = vmatpush1.msra.mxu0 0.0
    %973 = vmatprep.subr.mxu0 0.0
    %974 = vmatpush1.msra.mxu0 0.0
    %975 = vmatprep.subr.mxu0 0.0
    %976 = vmatpush1.msra.mxu0 0.0
    %977 = vmatprep.subr.mxu0 0.0
    %978 = vmatpush1.msra.mxu0 0.0
    %979 = vmatprep.subr.mxu0 0.0
    %980 = vmatpush1.msra.mxu0 0.0
    %981 = vmatprep.subr.mxu0 0.0
    %982 = vmatpush1.msra.mxu0 0.0
    %983 = vmatprep.subr.mxu0 0.0
    %984 = vmatpush1.msra.mxu0 0.0
    %985 = vmatprep.subr.mxu0 0.0
    %986 = vmatpush1.msra.mxu0 0.0
    %987 = vmatprep.subr.mxu0 0.0
    %988 = vmatpush1.msra.mxu0 0.0
    %989 = vmatprep.subr.mxu0 0.0
    %990 = vmatpush1.msra.mxu0 0.0
    %991 = vmatprep.subr.mxu0 0.0
    %992 = vmatpush1.msra.mxu0 0.0
    %993 = vmatprep.subr.mxu0 0.0
    %994 = vmatpush1.msra.mxu0 0.0
    %995 = vmatprep.subr.mxu0 0.0
    %996 = vmatpush1.msra.mxu0 0.0
    %997 = vmatprep.subr.mxu0 0.0
    %998 = vmatpush1.msra.mxu0 0.0
    %999 = vmatprep.subr.mxu0 0.0
    %1000 = vmatpush1.msra.mxu0 0.0
    %1001 = vmatprep.subr.mxu0 0.0
    %1002 = vmatpush1.msra.mxu0 0.0
    %1003 = vmatprep.subr.mxu0 0.0
    %1004 = vmatpush1.msra.mxu0 0.0
    %1005 = vmatprep.subr.mxu0 0.0
    %1006 = vmatpush1.msra.mxu0 0.0
    %1007 = vmatprep.subr.mxu0 0.0
    %1008 = vmatpush1.msra.mxu0 0.0
    %1009 = vmatprep.subr.mxu0 0.0
    %1010 = vmatpush1.msra.mxu0 0.0
    %1011 = vmatprep.subr.mxu0 0.0
    %1012 = vmatpush1.msra.mxu0 0.0
    %1013 = vmatprep.subr.mxu0 0.0
    %1014 = vmatpush1.msra.mxu0 0.0
    %1015 = vmatprep.subr.mxu0 0.0
    %1016 = vmatpush1.msra.mxu0 0.0
    %1017 = vmatprep.subr.mxu0 0.0
    %1018 = vmatpush1.msra.mxu0 0.0
    %1019 = vmatprep.mubr.f32.mxu0 0.0
    %1020 = vmatmul.mubr.f32.gmra.mrb[0].mxu0 %v953
    %v1021 = vpop.f32.mrb[0].mxu0
    %v1022 = vadd.f32 0.0, %v1021
    %v1023 = vpop.f32.mrb[0].mxu0
    %1024 = vdwg.mxu0
    %v1025 = vadd.f32 %v416, %v1022
    %v1026 = vtanh.pop %v1025
    %v1027 = vmul.f32 %v1026, %v435
    %v1028 = vadd.f32 %v1027, %v436
    %v1029 = vmul.f32 %v1028, %v936
    %1031 = vrot.lane.b32.xlu0 %v1028, 64
    %v1032 = vpop.permute.xlu0 %1031
    %v1034 = vmul.f32 %v1028, %v1032
    %1036 = vrot.lane.b32.xlu0 %v1034, 32
    %v1037 = vpop.permute.xlu0 %1036
    %v1039 = vadd.f32 %v1029, %v1037
    %v1040 = vtanh.pop %v1039
    %1042 = vrot.lane.b32.xlu0 %v1040, 64
    %v1043 = vpop.permute.xlu0 %1042
    %v1045 = vmul.f32 %v1028, %v1043
    %v1048 = vunpack.c.l.s4 1983009808
    %v1049 = vunpack.c.0.s8 %v1048
    %v1050 = vlaneseq
    %v1051 = vshrl.u32 %v1050, 7
    %v1052 = vsub.s32 %v1049, %v1051
    %v1053 = vrot.slane %v1045, %v1052
    %1054 = vrot.lane.b32.xlu0 %v1053, 32
    %v1055 = vpop.permute.xlu0 %1054
    %v1056 = vsel %vm219, %v1055, 0
    %1058 = vmatprep.subr.mxu0 0.0
    %1059 = vmatpush1.msra.mxu0 %v426
    %1060 = vmatprep.subr.mxu0 0.0
    %1061 = vmatpush1.msra.mxu0 %v427
    %1062 = vmatprep.subr.mxu0 0.0
    %1063 = vmatpush1.msra.mxu0 %v428
    %1064 = vmatprep.subr.mxu0 0.0
    %1065 = vmatpush1.msra.mxu0 %v429
    %1066 = vmatprep.subr.mxu0 0.0
    %1067 = vmatpush1.msra.mxu0 0.0
    %1068 = vmatprep.subr.mxu0 0.0
    %1069 = vmatpush1.msra.mxu0 0.0
    %1070 = vmatprep.subr.mxu0 0.0
    %1071 = vmatpush1.msra.mxu0 0.0
    %1072 = vmatprep.subr.mxu0 0.0
    %1073 = vmatpush1.msra.mxu0 0.0
    %1074 = vmatprep.subr.mxu0 0.0
    %1075 = vmatpush1.msra.mxu0 0.0
    %1076 = vmatprep.subr.mxu0 0.0
    %1077 = vmatpush1.msra.mxu0 0.0
    %1078 = vmatprep.subr.mxu0 0.0
    %1079 = vmatpush1.msra.mxu0 0.0
    %1080 = vmatprep.subr.mxu0 0.0
    %1081 = vmatpush1.msra.mxu0 0.0
    %1082 = vmatprep.subr.mxu0 0.0
    %1083 = vmatpush1.msra.mxu0 0.0
    %1084 = vmatprep.subr.mxu0 0.0
    %1085 = vmatpush1.msra.mxu0 0.0
    %1086 = vmatprep.subr.mxu0 0.0
    %1087 = vmatpush1.msra.mxu0 0.0
    %1088 = vmatprep.subr.mxu0 0.0
    %1089 = vmatpush1.msra.mxu0 0.0
    %1090 = vmatprep.subr.mxu0 0.0
    %1091 = vmatpush1.msra.mxu0 0.0
    %1092 = vmatprep.subr.mxu0 0.0
    %1093 = vmatpush1.msra.mxu0 0.0
    %1094 = vmatprep.subr.mxu0 0.0
    %1095 = vmatpush1.msra.mxu0 0.0
    %1096 = vmatprep.subr.mxu0 0.0
    %1097 = vmatpush1.msra.mxu0 0.0
    %1098 = vmatprep.subr.mxu0 0.0
    %1099 = vmatpush1.msra.mxu0 0.0
    %1100 = vmatprep.subr.mxu0 0.0
    %1101 = vmatpush1.msra.mxu0 0.0
    %1102 = vmatprep.subr.mxu0 0.0
    %1103 = vmatpush1.msra.mxu0 0.0
    %1104 = vmatprep.subr.mxu0 0.0
    %1105 = vmatpush1.msra.mxu0 0.0
    %1106 = vmatprep.subr.mxu0 0.0
    %1107 = vmatpush1.msra.mxu0 0.0
    %1108 = vmatprep.subr.mxu0 0.0
    %1109 = vmatpush1.msra.mxu0 0.0
    %1110 = vmatprep.subr.mxu0 0.0
    %1111 = vmatpush1.msra.mxu0 0.0
    %1112 = vmatprep.subr.mxu0 0.0
    %1113 = vmatpush1.msra.mxu0 0.0
    %1114 = vmatprep.subr.mxu0 0.0
    %1115 = vmatpush1.msra.mxu0 0.0
    %1116 = vmatprep.subr.mxu0 0.0
    %1117 = vmatpush1.msra.mxu0 0.0
    %1118 = vmatprep.subr.mxu0 0.0
    %1119 = vmatpush1.msra.mxu0 0.0
    %1120 = vmatprep.subr.mxu0 0.0
    %1121 = vmatpush1.msra.mxu0 0.0
    %1122 = vmatprep.mubr.f32.mxu0 0.0
    %1123 = vmatmul.mubr.f32.gmra.mrb[0].mxu0 %v1056
    %v1124 = vpop.f32.mrb[0].mxu0
    %v1125 = vadd.f32 0.0, %v1124
    %v1126 = vpop.f32.mrb[0].mxu0
    %1127 = vdwg.mxu0
    %v1128 = vadd.f32 %v415, %v1125
    %v1129 = vtanh.pop %v1128
    %v1130 = vmul.f32 %v1129, %v435
    %v1131 = vadd.f32 %v1130, %v436
    %v1132 = vmul.f32 %v1131, %v1039
    %1134 = vrot.lane.b32.xlu0 %v1131, 64
    %v1135 = vpop.permute.xlu0 %1134
    %v1137 = vmul.f32 %v1131, %v1135
    %1139 = vrot.lane.b32.xlu0 %v1137, 32
    %v1140 = vpop.permute.xlu0 %1139
    %v1142 = vadd.f32 %v1132, %v1140
    %v1143 = vtanh.pop %v1142
    %1145 = vrot.lane.b32.xlu0 %v1143, 64
    %v1146 = vpop.permute.xlu0 %1145
    %v1148 = vmul.f32 %v1131, %v1146
    %v1151 = vunpack.c.l.s4 1983009808
    %v1152 = vunpack.c.0.s8 %v1151
    %v1153 = vlaneseq
    %v1154 = vshrl.u32 %v1153, 7
    %v1155 = vsub.s32 %v1152, %v1154
    %v1156 = vrot.slane %v1148, %v1155
    %1157 = vrot.lane.b32.xlu0 %v1156, 32
    %v1158 = vpop.permute.xlu0 %1157
    %v1159 = vsel %vm219, %v1158, 0
    %1161 = vmatprep.subr.mxu0 0.0
    %1162 = vmatpush1.msra.mxu0 %v426
    %1163 = vmatprep.subr.mxu0 0.0
    %1164 = vmatpush1.msra.mxu0 %v427
    %1165 = vmatprep.subr.mxu0 0.0
    %1166 = vmatpush1.msra.mxu0 %v428
    %1167 = vmatprep.subr.mxu0 0.0
    %1168 = vmatpush1.msra.mxu0 %v429
    %1169 = vmatprep.subr.mxu0 0.0
    %1170 = vmatpush1.msra.mxu0 0.0
    %1171 = vmatprep.subr.mxu0 0.0
    %1172 = vmatpush1.msra.mxu0 0.0
    %1173 = vmatprep.subr.mxu0 0.0
    %1174 = vmatpush1.msra.mxu0 0.0
    %1175 = vmatprep.subr.mxu0 0.0
    %1176 = vmatpush1.msra.mxu0 0.0
    %1177 = vmatprep.subr.mxu0 0.0
    %1178 = vmatpush1.msra.mxu0 0.0
    %1179 = vmatprep.subr.mxu0 0.0
    %1180 = vmatpush1.msra.mxu0 0.0
    %1181 = vmatprep.subr.mxu0 0.0
    %1182 = vmatpush1.msra.mxu0 0.0
    %1183 = vmatprep.subr.mxu0 0.0
    %1184 = vmatpush1.msra.mxu0 0.0
    %1185 = vmatprep.subr.mxu0 0.0
    %1186 = vmatpush1.msra.mxu0 0.0
    %1187 = vmatprep.subr.mxu0 0.0
    %1188 = vmatpush1.msra.mxu0 0.0
    %1189 = vmatprep.subr.mxu0 0.0
    %1190 = vmatpush1.msra.mxu0 0.0
    %1191 = vmatprep.subr.mxu0 0.0
    %1192 = vmatpush1.msra.mxu0 0.0
    %1193 = vmatprep.subr.mxu0 0.0
    %1194 = vmatpush1.msra.mxu0 0.0
    %1195 = vmatprep.subr.mxu0 0.0
    %1196 = vmatpush1.msra.mxu0 0.0
    %1197 = vmatprep.subr.mxu0 0.0
    %1198 = vmatpush1.msra.mxu0 0.0
    %1199 = vmatprep.subr.mxu0 0.0
    %1200 = vmatpush1.msra.mxu0 0.0
    %1201 = vmatprep.subr.mxu0 0.0
    %1202 = vmatpush1.msra.mxu0 0.0
    %1203 = vmatprep.subr.mxu0 0.0
    %1204 = vmatpush1.msra.mxu0 0.0
    %1205 = vmatprep.subr.mxu0 0.0
    %1206 = vmatpush1.msra.mxu0 0.0
    %1207 = vmatprep.subr.mxu0 0.0
    %1208 = vmatpush1.msra.mxu0 0.0
    %1209 = vmatprep.subr.mxu0 0.0
    %1210 = vmatpush1.msra.mxu0 0.0
    %1211 = vmatprep.subr.mxu0 0.0
    %1212 = vmatpush1.msra.mxu0 0.0
    %1213 = vmatprep.subr.mxu0 0.0
    %1214 = vmatpush1.msra.mxu0 0.0
    %1215 = vmatprep.subr.mxu0 0.0
    %1216 = vmatpush1.msra.mxu0 0.0
    %1217 = vmatprep.subr.mxu0 0.0
    %1218 = vmatpush1.msra.mxu0 0.0
    %1219 = vmatprep.subr.mxu0 0.0
    %1220 = vmatpush1.msra.mxu0 0.0
    %1221 = vmatprep.subr.mxu0 0.0
    %1222 = vmatpush1.msra.mxu0 0.0
    %1223 = vmatprep.subr.mxu0 0.0
    %1224 = vmatpush1.msra.mxu0 0.0
    %1225 = vmatprep.mubr.f32.mxu0 0.0
    %1226 = vmatmul.mubr.f32.gmra.mrb[0].mxu0 %v1159
    %v1227 = vpop.f32.mrb[0].mxu0
    %v1228 = vadd.f32 0.0, %v1227
    %v1229 = vpop.f32.mrb[0].mxu0
    %1230 = vdwg.mxu0
    %v1231 = vadd.f32 %v417, %v1228
    %v1232 = vtanh.pop %v1231
    %v1233 = vmul.f32 %v1232, %v435
    %v1234 = vadd.f32 %v1233, %v436
    %v1235 = vmul.f32 %v1234, %v1142
    %1237 = vrot.lane.b32.xlu0 %v1234, 64
    %v1238 = vpop.permute.xlu0 %1237
    %v1240 = vmul.f32 %v1234, %v1238
    %1242 = vrot.lane.b32.xlu0 %v1240, 32
    %v1243 = vpop.permute.xlu0 %1242
    %v1245 = vadd.f32 %v1235, %v1243
    %v1246 = vtanh.pop %v1245
    %1248 = vrot.lane.b32.xlu0 %v1246, 64
    %v1249 = vpop.permute.xlu0 %1248
    %v1251 = vmul.f32 %v1234, %v1249
    %v1253 = vunpack.c.l.s4 1966171168
    %v1254 = vunpack.c.0.s8 %v1253
    %v1255 = vlaneseq
    %v1256 = vshrl.u32 %v1255, 7
    %v1257 = vsub.s32 %v1254, %v1256
    %v1258 = vrot.slane %v530, %v1257
    %v1259 = vcombine.high %v1258, %v1258
    %v1263 = vunpack.c.l.s4 1966171168
    %v1264 = vunpack.c.0.s8 %v1263
    %v1265 = vlaneseq
    %v1266 = vshrl.u32 %v1265, 7
    %v1267 = vsub.s32 %v1264, %v1266
    %v1268 = vrot.slane %v633, %v1267
    %v1269 = vcombine.high %v1268, %v1268
    %v1271 = vunpack.c.l.s4 1966171168
    %v1272 = vunpack.c.0.s8 %v1271
    %v1273 = vlaneseq
    %v1274 = vshrl.u32 %v1273, 7
    %v1275 = vsub.s32 %v1272, %v1274
    %v1276 = vrot.slane %v736, %v1275
    %v1277 = vcombine.high %v1276, %v1276
    %v1279 = vunpack.c.l.s4 1966171168
    %v1280 = vunpack.c.0.s8 %v1279
    %v1281 = vlaneseq
    %v1282 = vshrl.u32 %v1281, 7
    %v1283 = vsub.s32 %v1280, %v1282
    %v1284 = vrot.slane %v839, %v1283
    %v1285 = vcombine.high %v1284, %v1284
    %v1287 = vunpack.c.l.s4 1966171168
    %v1288 = vunpack.c.0.s8 %v1287
    %v1289 = vlaneseq
    %v1290 = vshrl.u32 %v1289, 7
    %v1291 = vsub.s32 %v1288, %v1290
    %v1292 = vrot.slane %v942, %v1291
    %v1293 = vcombine.high %v1292, %v1292
    %v1295 = vunpack.c.l.s4 1966171168
    %v1296 = vunpack.c.0.s8 %v1295
    %v1297 = vlaneseq
    %v1298 = vshrl.u32 %v1297, 7
    %v1299 = vsub.s32 %v1296, %v1298
    %v1300 = vrot.slane %v1045, %v1299
    %v1301 = vcombine.high %v1300, %v1300
    %v1303 = vunpack.c.l.s4 1966171168
    %v1304 = vunpack.c.0.s8 %v1303
    %v1305 = vlaneseq
    %v1306 = vshrl.u32 %v1305, 7
    %v1307 = vsub.s32 %v1304, %v1306
    %v1308 = vrot.slane %v1148, %v1307
    %v1309 = vcombine.high %v1308, %v1308
    %v1312 = vunpack.c.l.s4 1966171168
    %v1313 = vunpack.c.0.s8 %v1312
    %v1314 = vlaneseq
    %v1315 = vshrl.u32 %v1314, 7
    %v1316 = vsub.s32 %v1313, %v1315
    %v1317 = vrot.slane %v1251, %v1316
    %v1318 = vcombine.high %v1317, %v1317
    %v1319 = vlaneseq
    %v1320 = vshrl.u32 %v1319, 7
    %v1321 = vsub.s32 0, %v1320
    %v1322 = vrot.slane %v1268, %v1321
    %v1323 = vlaneseq
    %v1324 = vshrl.u32 %v1323, 7
    %v1325 = vsub.s32 0, %v1324
    %v1326 = vrot.slane %v1269, %v1325
    %v1329 = vlaneseq
    %v1330 = vshrl.u32 %v1329, 7
    %v1331 = vsub.s32 0, %v1330
    %v1332 = vrot.slane %v1276, %v1331
    %v1333 = vlaneseq
    %v1334 = vshrl.u32 %v1333, 7
    %v1335 = vsub.s32 0, %v1334
    %v1336 = vrot.slane %v1277, %v1335
    %v1339 = vlaneseq
    %v1340 = vshrl.u32 %v1339, 7
    %v1341 = vsub.s32 0, %v1340
    %v1342 = vrot.slane %v1284, %v1341
    %v1343 = vlaneseq
    %v1344 = vshrl.u32 %v1343, 7
    %v1345 = vsub.s32 0, %v1344
    %v1346 = vrot.slane %v1285, %v1345
    %v1349 = vlaneseq
    %v1350 = vshrl.u32 %v1349, 7
    %v1351 = vsub.s32 0, %v1350
    %v1352 = vrot.slane %v1292, %v1351
    %v1353 = vlaneseq
    %v1354 = vshrl.u32 %v1353, 7
    %v1355 = vsub.s32 0, %v1354
    %v1356 = vrot.slane %v1293, %v1355
    %v1359 = vlaneseq
    %v1360 = vshrl.u32 %v1359, 7
    %v1361 = vsub.s32 0, %v1360
    %v1362 = vrot.slane %v1300, %v1361
    %v1363 = vlaneseq
    %v1364 = vshrl.u32 %v1363, 7
    %v1365 = vsub.s32 0, %v1364
    %v1366 = vrot.slane %v1301, %v1365
    %v1369 = vlaneseq
    %v1370 = vshrl.u32 %v1369, 7
    %v1371 = vsub.s32 0, %v1370
    %v1372 = vrot.slane %v1308, %v1371
    %v1373 = vlaneseq
    %v1374 = vshrl.u32 %v1373, 7
    %v1375 = vsub.s32 0, %v1374
    %v1376 = vrot.slane %v1309, %v1375
    %v1379 = vlaneseq
    %v1380 = vshrl.u32 %v1379, 7
    %v1381 = vsub.s32 0, %v1380
    %v1382 = vrot.slane %v1317, %v1381
    %v1383 = vlaneseq
    %v1384 = vshrl.u32 %v1383, 7
    %v1385 = vsub.s32 0, %v1384
    %v1386 = vrot.slane %v1318, %v1385
    %vm1389 = vcmask 1040384
    %v1390 = vsel %vm1389, %v1258, %v1322
    %v1391 = vsel %vm1389, %v1259, %v1326
    %vm1392 = vcmask 1041408
    %v1393 = vsel %vm1392, %v1390, %v1332
    %v1394 = vsel %vm1392, %v1391, %v1336
    %vm1395 = vcmask 1042432
    %v1396 = vsel %vm1395, %v1393, %v1342
    %v1397 = vsel %vm1395, %v1394, %v1346
    %vm1398 = vcmask 1043456
    %v1399 = vsel %vm1398, %v1396, %v1352
    %v1400 = vsel %vm1398, %v1397, %v1356
    %vm1401 = vcmask 1044480
    %v1402 = vsel %vm1401, %v1399, %v1362
    %v1403 = vsel %vm1401, %v1400, %v1366
    %vm1404 = vcmask 1045504
    %v1405 = vsel %vm1404, %v1402, %v1372
    %v1406 = vsel %vm1404, %v1403, %v1376
    %vm1407 = vcmask 1046528
    %v1408 = vsel %vm1407, %v1405, %v1382
    %v1409 = vsel %vm1407, %v1406, %v1386
    %v1410 = vld [vmem:[#allocation10] sm:$0xff]
    %v1411 = vld [vmem:[#allocation10 + $0x8] sm:$0xff]
    %v1412 = vld [vmem:[#allocation10 + $0x10] sm:$0xff]
    %v1413 = vld [vmem:[#allocation10 + $0x18] sm:$0xff]
    %v1414 = vld [vmem:[%s7] sm:$0x1]
    %v1416 = vlaneseq
    %v1417 = vshrl.u32 %v1416, 7
    %v1418 = vsub.s32 0, %v1417
    %v1419 = vrot.slane %v1414, %v1418
    %1423 = vrot.lane.b32.xlu0 %v1408, 32
    %v1424 = vpop.permute.xlu0 %1423
    %1425 = vrot.lane.b32.xlu0 %v1409, 32
    %v1426 = vpop.permute.xlu0 %1425
    %v1427 = vsel %vm219, %v1424, 0
    %v1429 = vsel %vm219, %v1426, 0
    %1431 = vmatprep.subr.mxu0 0.0
    %1432 = vmatpush1.msra.mxu0 %v1410
    %1433 = vmatprep.subr.mxu0 0.0
    %1434 = vmatpush1.msra.mxu0 %v1411
    %1435 = vmatprep.subr.mxu0 0.0
    %1436 = vmatpush1.msra.mxu0 %v1412
    %1437 = vmatprep.subr.mxu0 0.0
    %1438 = vmatpush1.msra.mxu0 %v1413
    %1439 = vmatprep.subr.mxu0 0.0
    %1440 = vmatpush1.msra.mxu0 0.0
    %1441 = vmatprep.subr.mxu0 0.0
    %1442 = vmatpush1.msra.mxu0 0.0
    %1443 = vmatprep.subr.mxu0 0.0
    %1444 = vmatpush1.msra.mxu0 0.0
    %1445 = vmatprep.subr.mxu0 0.0
    %1446 = vmatpush1.msra.mxu0 0.0
    %1447 = vmatprep.subr.mxu0 0.0
    %1448 = vmatpush1.msra.mxu0 0.0
    %1449 = vmatprep.subr.mxu0 0.0
    %1450 = vmatpush1.msra.mxu0 0.0
    %1451 = vmatprep.subr.mxu0 0.0
    %1452 = vmatpush1.msra.mxu0 0.0
    %1453 = vmatprep.subr.mxu0 0.0
    %1454 = vmatpush1.msra.mxu0 0.0
    %1455 = vmatprep.subr.mxu0 0.0
    %1456 = vmatpush1.msra.mxu0 0.0
    %1457 = vmatprep.subr.mxu0 0.0
    %1458 = vmatpush1.msra.mxu0 0.0
    %1459 = vmatprep.subr.mxu0 0.0
    %1460 = vmatpush1.msra.mxu0 0.0
    %1461 = vmatprep.subr.mxu0 0.0
    %1462 = vmatpush1.msra.mxu0 0.0
    %1463 = vmatprep.subr.mxu0 0.0
    %1464 = vmatpush1.msra.mxu0 0.0
    %1465 = vmatprep.subr.mxu0 0.0
    %1466 = vmatpush1.msra.mxu0 0.0
    %1467 = vmatprep.subr.mxu0 0.0
    %1468 = vmatpush1.msra.mxu0 0.0
    %1469 = vmatprep.subr.mxu0 0.0
    %1470 = vmatpush1.msra.mxu0 0.0
    %1471 = vmatprep.subr.mxu0 0.0
    %1472 = vmatpush1.msra.mxu0 0.0
    %1473 = vmatprep.subr.mxu0 0.0
    %1474 = vmatpush1.msra.mxu0 0.0
    %1475 = vmatprep.subr.mxu0 0.0
    %1476 = vmatpush1.msra.mxu0 0.0
    %1477 = vmatprep.subr.mxu0 0.0
    %1478 = vmatpush1.msra.mxu0 0.0
    %1479 = vmatprep.subr.mxu0 0.0
    %1480 = vmatpush1.msra.mxu0 0.0
    %1481 = vmatprep.subr.mxu0 0.0
    %1482 = vmatpush1.msra.mxu0 0.0
    %1483 = vmatprep.subr.mxu0 0.0
    %1484 = vmatpush1.msra.mxu0 0.0
    %1485 = vmatprep.subr.mxu0 0.0
    %1486 = vmatpush1.msra.mxu0 0.0
    %1487 = vmatprep.subr.mxu0 0.0
    %1488 = vmatpush1.msra.mxu0 0.0
    %1489 = vmatprep.subr.mxu0 0.0
    %1490 = vmatpush1.msra.mxu0 0.0
    %1491 = vmatprep.subr.mxu0 0.0
    %1492 = vmatpush1.msra.mxu0 0.0
    %1493 = vmatprep.subr.mxu0 0.0
    %1494 = vmatpush1.msra.mxu0 0.0
    %1495 = vmatprep.mubr.f32.mxu0 0.0
    %1496 = vmatmul.mubr.f32.gmra.mrb[0].mxu0 %v1427
    %v1497 = vpop.f32.mrb[0].mxu0
    %v1498 = vadd.f32 %v1419, %v1497
    %v1499 = vpop.f32.mrb[0].mxu0
    %1500 = vmatprep.mubr.f32.mxu0 0.0
    %1501 = vmatmul.mubr.f32.gmra.mrb[0].mxu0 %v1429
    %v1502 = vpop.f32.mrb[0].mxu0
    %v1503 = vadd.f32 %v1419, %v1502
    %v1504 = vpop.f32.mrb[0].mxu0
    %1505 = vdwg.mxu0
    %v1506 = vadd.f32 %v1498, %v1503
    %v1507 = vrot.slane %v1506, 4
    %v1508 = vadd.f32 %v1506, %v1507
    %v1509 = vrot.slane %v1508, 2
    %v1510 = vadd.f32 %v1508, %v1509
    %v1511 = vrot.slane %v1510, 1
    %v1512 = vadd.f32 %v1510, %v1511
    %v1513 = vmul.f32 %v1512, 0.0625
    %v1514 = vsub.f32 %v1498, %v1513
    %v1515 = vsub.f32 %v1503, %v1513
    %v1516 = vmul.f32 %v1514, %v1514
    %v1517 = vmul.f32 %v1515, %v1515
    %v1518 = vadd.f32 %v1516, %v1517
    %v1519 = vrot.slane %v1518, 4
    %v1520 = vadd.f32 %v1518, %v1519
    %v1521 = vrot.slane %v1520, 2
    %v1522 = vadd.f32 %v1520, %v1521
    %v1523 = vrot.slane %v1522, 1
    %v1524 = vadd.f32 %v1522, %v1523
    %v1525 = vmul.f32 %v1524, 0.0625
    %v1526 = vadd.f32 %v1525, 1e-05
    %v1527 = vrsqrt.pop %v1526
    %v1528 = vmul.f32 %v1514, %v1527
    %v1529 = vmul.f32 %v1515, %v1527
    %v1530 = vld [vmem:[%s8] sm:$0x1]
    %v1532 = vlaneseq
    %v1533 = vshrl.u32 %v1532, 7
    %v1534 = vsub.s32 0, %v1533
    %v1535 = vrot.slane %v1530, %v1534
    %v1537 = vmul.f32 %v1528, %v1535
    %v1538 = vmul.f32 %v1529, %v1535
    %v1539 = vld [vmem:[%s9] sm:$0x1]
    %v1541 = vlaneseq
    %v1542 = vshrl.u32 %v1541, 7
    %v1543 = vsub.s32 0, %v1542
    %v1544 = vrot.slane %v1539, %v1543
    %v1546 = vadd.f32 %v1537, %v1544
    %v1547 = vadd.f32 %v1538, %v1544
    %v1548 = vmax.f32 %v1546, 0.0
    %v1549 = vmax.f32 %v1547, 0.0
    %v1550 = vld [vmem:[#allocation11] sm:$0xff]
    %v1551 = vld [vmem:[#allocation11 + $0x8] sm:$0xff]
    %v1552 = vld [vmem:[#allocation11 + $0x10] sm:$0xff]
    %v1553 = vld [vmem:[#allocation11 + $0x18] sm:$0xff]
    %v1554 = vld [vmem:[#allocation11 + $0x20] sm:$0xff]
    %v1555 = vld [vmem:[#allocation11 + $0x28] sm:$0xff]
    %v1556 = vld [vmem:[#allocation11 + $0x30] sm:$0xff]
    %v1557 = vld [vmem:[#allocation11 + $0x38] sm:$0xff]
    %v1558 = vld [vmem:[#allocation11 + $0x40] sm:$0xff]
    %v1559 = vld [vmem:[#allocation11 + $0x48] sm:$0xff]
    %v1560 = vld [vmem:[#allocation11 + $0x50] sm:$0xff]
    %v1561 = vld [vmem:[#allocation11 + $0x58] sm:$0xff]
    %v1562 = vld [vmem:[#allocation11 + $0x60] sm:$0xff]
    %v1563 = vld [vmem:[#allocation11 + $0x68] sm:$0xff]
    %v1564 = vld [vmem:[#allocation11 + $0x70] sm:$0xff]
    %v1565 = vld [vmem:[#allocation11 + $0x78] sm:$0xff]
    %v1566 = vld [vmem:[%s11] sm:$0x1]
    %v1568 = vlaneseq
    %v1569 = vshrl.u32 %v1568, 7
    %v1570 = vsub.s32 0, %v1569
    %v1571 = vrot.slane %v1566, %v1570
    %1573 = vmatprep.subr.mxu0 0.0
    %1574 = vmatpush1.msra.mxu0 %v1550
    %1575 = vmatprep.subr.mxu0 0.0
    %1576 = vmatpush1.msra.mxu0 %v1551
    %1577 = vmatprep.subr.mxu0 0.0
    %1578 = vmatpush1.msra.mxu0 %v1552
    %1579 = vmatprep.subr.mxu0 0.0
    %1580 = vmatpush1.msra.mxu0 %v1553
    %1581 = vmatprep.subr.mxu0 0.0
    %1582 = vmatpush1.msra.mxu0 %v1554
    %1583 = vmatprep.subr.mxu0 0.0
    %1584 = vmatpush1.msra.mxu0 %v1555
    %1585 = vmatprep.subr.mxu0 0.0
    %1586 = vmatpush1.msra.mxu0 %v1556
    %1587 = vmatprep.subr.mxu0 0.0
    %1588 = vmatpush1.msra.mxu0 %v1557
    %1589 = vmatprep.subr.mxu0 0.0
    %1590 = vmatpush1.msra.mxu0 %v1558
    %1591 = vmatprep.subr.mxu0 0.0
    %1592 = vmatpush1.msra.mxu0 %v1559
    %1593 = vmatprep.subr.mxu0 0.0
    %1594 = vmatpush1.msra.mxu0 %v1560
    %1595 = vmatprep.subr.mxu0 0.0
    %1596 = vmatpush1.msra.mxu0 %v1561
    %1597 = vmatprep.subr.mxu0 0.0
    %1598 = vmatpush1.msra.mxu0 %v1562
    %1599 = vmatprep.subr.mxu0 0.0
    %1600 = vmatpush1.msra.mxu0 %v1563
    %1601 = vmatprep.subr.mxu0 0.0
    %1602 = vmatpush1.msra.mxu0 %v1564
    %1603 = vmatprep.subr.mxu0 0.0
    %1604 = vmatpush1.msra.mxu0 %v1565
    %1605 = vmatprep.subr.mxu0 0.0
    %1606 = vmatpush1.msra.mxu0 0.0
    %1607 = vmatprep.subr.mxu0 0.0
    %1608 = vmatpush1.msra.mxu0 0.0
    %1609 = vmatprep.subr.mxu0 0.0
    %1610 = vmatpush1.msra.mxu0 0.0
    %1611 = vmatprep.subr.mxu0 0.0
    %1612 = vmatpush1.msra.mxu0 0.0
    %1613 = vmatprep.subr.mxu0 0.0
    %1614 = vmatpush1.msra.mxu0 0.0
    %1615 = vmatprep.subr.mxu0 0.0
    %1616 = vmatpush1.msra.mxu0 0.0
    %1617 = vmatprep.subr.mxu0 0.0
    %1618 = vmatpush1.msra.mxu0 0.0
    %1619 = vmatprep.subr.mxu0 0.0
    %1620 = vmatpush1.msra.mxu0 0.0
    %1621 = vmatprep.subr.mxu0 0.0
    %1622 = vmatpush1.msra.mxu0 0.0
    %1623 = vmatprep.subr.mxu0 0.0
    %1624 = vmatpush1.msra.mxu0 0.0
    %1625 = vmatprep.subr.mxu0 0.0
    %1626 = vmatpush1.msra.mxu0 0.0
    %1627 = vmatprep.subr.mxu0 0.0
    %1628 = vmatpush1.msra.mxu0 0.0
    %1629 = vmatprep.subr.mxu0 0.0
    %1630 = vmatpush1.msra.mxu0 0.0
    %1631 = vmatprep.subr.mxu0 0.0
    %1632 = vmatpush1.msra.mxu0 0.0
    %1633 = vmatprep.subr.mxu0 0.0
    %1634 = vmatpush1.msra.mxu0 0.0
    %1635 = vmatprep.subr.mxu0 0.0
    %1636 = vmatpush1.msra.mxu0 0.0
    %1637 = vmatprep.mubr.f32.mxu0 0.0
    %1638 = vmatmul.mubr.f32.gmra.mrb[0].mxu0 %v1548
    %v1639 = vpop.f32.mrb[0].mxu0
    %v1640 = vadd.f32 %v1571, %v1639
    %v1641 = vpop.f32.mrb[0].mxu0
    %1642 = vmatprep.mubr.f32.mxu0 0.0
    %1643 = vmatmul.mubr.f32.gmra.mrb[0].mxu0 %v1549
    %v1644 = vpop.f32.mrb[0].mxu0
    %v1645 = vadd.f32 %v1571, %v1644
    %v1646 = vpop.f32.mrb[0].mxu0
    %1647 = vdwg.mxu0
    %1648 = vst [vmem:[#allocation13] sm:$0xff] %v1640
    %1649 = vst [vmem:[#allocation13 + $0x8] sm:$0xff] %v1645
    // Predicated region
    $region74: #{tpu_custom_call.1} parent=1 // pred_check
      _
    $region75: #{tpu_custom_call.1} parent=1 // pred_check_branch
      %1651 = sbr.rel (0) target = $region77
    $region76: #{tpu_custom_call.1} parent=1 // pred_region
      %s1653 = ssub.s32 256, 256
      %1654 = vsyncadd [#allocation4], %s1653
      %s1655 = sshll.u32 [#allocation13], 4
      %s1656 = int_to_ptr.vmem [resolvable:$true] %s1655
      %1661 = dma.vmem_to_hbm [thread:$0]  %s1656, 256, %s12, [#allocation4], 128, 128, 8
    $region77: #{tpu_custom_call.1} parent=1 // pred_fallthru
      _
    // Predicated region
    $region78: #{tpu_custom_call.1} parent=1 // pred_check
      _
    $region79: #{tpu_custom_call.1} parent=1 // pred_check_branch
      %1663 = sbr.rel (0) target = $region81
    $region80: #{tpu_custom_call.1} parent=1 // pred_region
      %1664 = dma.done [#allocation4], 256
    $region81: #{tpu_custom_call.1} parent=1 // pred_fallthru
      _
    %1665 = vsyncpa [#allocation3], 1
    %1666 = vsyncpa [#allocation6], 1
    %1667 = vsyncpa [#allocation9], 1
    %1668 = vsyncpa [#allocation12], 1
    %1669 = vsyncpa [#allocation4], 1

</llo_original>
